<compile_context>
chip_gen: v5e
topology: v5e:2x2
jax: 0.10.0
libtpu: 0.0.40
codegen_flags: <defaults>
</compile_context>

<pallas_src>
import functools

import numpy as np
import jax
import jax.numpy as jnp
from jax import lax
from jax.experimental import pallas as pl
from jax.experimental.pallas import tpu as pltpu


def _round_up(x: int, m: int) -> int:
    return (x + m - 1) // m * m


# ----------------------------------------------------------------------------
# Row-gridded GEMM (+ bias, optional tanh).  Used for the hoisted input
# projection x @ W_ih + (b_ih + b_hh) and for the final tanh(Linear).
# ----------------------------------------------------------------------------
def _gemm_bias_kernel(x_ref, w_ref, b_ref, o_ref, *, apply_tanh):
    # Default matmul precision: single-pass bf16 on the MXU, f32 accumulate.
    acc = jnp.dot(x_ref[...], w_ref[...],
                  preferred_element_type=jnp.float32) + b_ref[...]
    if apply_tanh:
        acc = jnp.tanh(acc)
    o_ref[...] = acc.astype(o_ref.dtype)


def _gemm_bias(x2d, w, b, *, apply_tanh, tm=512):
    """x2d: (M, K), w: (K, N), b: (1, N) -> (M, N).

    Caller guarantees M multiple of 8 and K, N multiples of 128.
    """
    M, K = x2d.shape
    N = w.shape[1]
    TM = tm if M >= tm else M
    Mp = _round_up(M, TM)
    if Mp != M:
        x2d = jnp.pad(x2d, ((0, Mp - M), (0, 0)))
    out = pl.pallas_call(
        functools.partial(_gemm_bias_kernel, apply_tanh=apply_tanh),
        out_shape=jax.ShapeDtypeStruct((Mp, N), jnp.float32),
        grid=(Mp // TM,),
        in_specs=[pl.BlockSpec((TM, K), lambda i: (i, 0)),
                  pl.BlockSpec((K, N), lambda i: (0, 0)),
                  pl.BlockSpec((1, N), lambda i: (0, 0))],
        out_specs=pl.BlockSpec((TM, N), lambda i: (i, 0)),
        compiler_params=pltpu.CompilerParams(
            dimension_semantics=("parallel",)),
    )(x2d, w, b)
    return out[:M] if Mp != M else out


# ----------------------------------------------------------------------------
# Fused bidirectional, length-masked LSTM recurrence.  Input gate tensors
# (x @ W_ih + bias) are precomputed; only h @ W_hh is inside the serial loop.
# ----------------------------------------------------------------------------
def _bilstm_rec_kernel(gf_ref, gb_ref, mask_ref, whh_f_ref, whh_b_ref,
                       y_ref, hn_ref, cn_ref, ybwd_ref):
    T, B, _ = gf_ref.shape
    C = whh_f_ref.shape[0]

    # Hoist the recurrent weights out of the loop (read once, reuse T times).
    whh_f = whh_f_ref[...]
    whh_b = whh_b_ref[...]

    def gate_math(pre, c):
        i_g = jax.nn.sigmoid(pre[:, 0 * C:1 * C])
        f_g = jax.nn.sigmoid(pre[:, 1 * C:2 * C])
        g_g = jnp.tanh(pre[:, 2 * C:3 * C])
        o_g = jax.nn.sigmoid(pre[:, 3 * C:4 * C])
        c_new = f_g * c + i_g * g_g
        h_new = o_g * jnp.tanh(c_new)
        return h_new, c_new

    def body(i, carry):
        h_f, c_f, h_b, c_b = carry
        t_f = i
        t_b = T - 1 - i
        # fwd (t = i) and bwd (t = T-1-i) are independent -> their MXU / EUP /
        # VPU work interleaves inside one VLIW schedule.
        pre_f = gf_ref[t_f] + jnp.dot(h_f, whh_f,
                                      preferred_element_type=jnp.float32)
        pre_b = gb_ref[t_b] + jnp.dot(h_b, whh_b,
                                      preferred_element_type=jnp.float32)
        hf_new, cf_new = gate_math(pre_f, c_f)
        hb_new, cb_new = gate_math(pre_b, c_b)
        m_f = mask_ref[t_f]                      # (B, 1) 1.0 inside sequence
        m_b = mask_ref[t_b]
        h_f = m_f * hf_new + (1.0 - m_f) * h_f   # hold state past seq end
        c_f = m_f * cf_new + (1.0 - m_f) * c_f
        h_b = m_b * hb_new + (1.0 - m_b) * h_b
        c_b = m_b * cb_new + (1.0 - m_b) * c_b
        y_ref[t_f] = m_f * hf_new                # output zero at padded steps
        ybwd_ref[t_b] = m_b * hb_new
        return (h_f, c_f, h_b, c_b)

    zeros = jnp.zeros((B, C), jnp.float32)
    h_f, c_f, h_b, c_b = lax.fori_loop(0, T, body, (zeros, zeros, zeros, zeros))

    # Sum the two directional halves in one vectorized pass (no per-step RMW).
    y_ref[...] = y_ref[...] + ybwd_ref[...]
    hn_ref[0] = h_f
    hn_ref[1] = h_b
    cn_ref[0] = c_f
    cn_ref[1] = c_b


def _bilstm_recurrence(gates_f, gates_b, mask_tm, whh_f, whh_b):
    T, B, _ = gates_f.shape
    C = whh_f.shape[0]
    vmem = pl.BlockSpec(memory_space=pltpu.MemorySpace.VMEM)
    return pl.pallas_call(
        _bilstm_rec_kernel,
        out_shape=(jax.ShapeDtypeStruct((T, B, C), jnp.float32),
                   jax.ShapeDtypeStruct((2, B, C), jnp.float32),
                   jax.ShapeDtypeStruct((2, B, C), jnp.float32)),
        in_specs=[vmem] * 5,
        out_specs=(vmem, vmem, vmem),
        scratch_shapes=[pltpu.VMEM((T, B, C), jnp.float32)],
    )(gates_f, gates_b, mask_tm, whh_f, whh_b)


# ----------------------------------------------------------------------------
# Zero-padding helpers (pad each gate block separately so the i/f/g/o layout
# is preserved at the padded width; padded channels provably stay zero).
# ----------------------------------------------------------------------------
def _pad_lstm_w(w, rows, rows_p, cdim, cp):
    w = w.reshape(rows, 4, cdim)
    w = jnp.pad(w, ((0, rows_p - rows), (0, 0), (0, cp - cdim)))
    return w.reshape(rows_p, 4 * cp)


def _pad_lstm_b(b, cdim, cp):
    b = b.reshape(1, 4, cdim)
    b = jnp.pad(b, ((0, 0), (0, 0), (0, cp - cdim)))
    return b.reshape(1, 4 * cp)


# ----------------------------------------------------------------------------
# Module-level forward (glue in plain JAX).
# ----------------------------------------------------------------------------
def rnn_forward(xs_pad, ilens, params):
    """xs_pad: (B, Tmax, idim) f32, ilens: (B,) int32 (max(ilens) == Tmax)."""
    B, T, idim = xs_pad.shape
    cdim = params["layers"][0]["whh_f"].shape[0]
    hdim = params["w_last"].shape[1]

    Bp = _round_up(B, 8)            # sublane alignment
    Cp = _round_up(cdim, 128)       # lane alignment
    Hp = _round_up(hdim, 128)
    Dp0 = _round_up(idim, 128)

    # time-major + pad batch (sublane) / features (lane) with zeros
    x_tm = jnp.transpose(xs_pad, (1, 0, 2))
    x_tm = jnp.pad(x_tm, ((0, 0), (0, Bp - B), (0, Dp0 - idim)))

    ilens_p = jnp.pad(ilens.astype(jnp.int32), (0, Bp - B))     # pad len = 0
    mask_tm = (jnp.arange(T, dtype=jnp.int32)[:, None]
               < ilens_p[None, :]).astype(jnp.float32).reshape(T, Bp, 1)

    elayer_states = []
    for lp in params["layers"]:
        din = lp["wih_f"].shape[0]
        Dp = _round_up(din, 128)

        wih_f = _pad_lstm_w(lp["wih_f"], din, Dp, cdim, Cp)
        wih_b = _pad_lstm_w(lp["wih_b"], din, Dp, cdim, Cp)
        whh_f = _pad_lstm_w(lp["whh_f"], cdim, Cp, cdim, Cp)
        whh_b = _pad_lstm_w(lp["whh_b"], cdim, Cp, cdim, Cp)
        b_f = _pad_lstm_b(lp["b_f"], cdim, Cp)
        b_b = _pad_lstm_b(lp["b_b"], cdim, Cp)

        # 1) hoisted input projections: big pipelined MXU GEMMs (M = T*Bp)
        x2d = x_tm.reshape(T * Bp, Dp)
        gates_f = _gemm_bias(x2d, wih_f, b_f,
                             apply_tanh=False).reshape(T, Bp, 4 * Cp)
        gates_b = _gemm_bias(x2d, wih_b, b_b,
                             apply_tanh=False).reshape(T, Bp, 4 * Cp)

        # 2) fused fwd/bwd recurrence (only h @ W_hh on the serial path)
        y_tm, h_n, c_n = _bilstm_recurrence(gates_f, gates_b, mask_tm,
                                            whh_f, whh_b)
        elayer_states.append((h_n[:, :B, :cdim], c_n[:, :B, :cdim]))
        x_tm = y_tm                 # dropout: eval-mode identity

    # final projection tanh(Linear) over ALL positions, like the PyTorch code
    w_last = jnp.pad(params["w_last"], ((0, Cp - cdim), (0, Hp - hdim)))
    b_last = jnp.pad(params["b_last"], ((0, 0), (0, Hp - hdim)))
    proj = _gemm_bias(x_tm.reshape(T * Bp, Cp), w_last, b_last, apply_tanh=True)
    xs_out = proj.reshape(T, Bp, Hp).transpose(1, 0, 2)[:B, :, :hdim]
    return xs_out, ilens, elayer_states


# ----------------------------------------------------------------------------
# Deterministic parameter init (PyTorch LSTM/Linear shapes, stored transposed).
# ----------------------------------------------------------------------------
def init_params(key, idim, elayers, cdim, hdim):
    k = 1.0 / np.sqrt(cdim)
    layers = []
    for layer in range(elayers):
        din = idim if layer == 0 else cdim
        lp = {}
        for d in ("f", "b"):
            key, k1, k2, k3, k4 = jax.random.split(key, 5)
            lp[f"wih_{d}"] = jax.random.uniform(k1, (din, 4 * cdim), jnp.float32, -k, k)
            lp[f"whh_{d}"] = jax.random.uniform(k2, (cdim, 4 * cdim), jnp.float32, -k, k)
            b_ih = jax.random.uniform(k3, (1, 4 * cdim), jnp.float32, -k, k)
            b_hh = jax.random.uniform(k4, (1, 4 * cdim), jnp.float32, -k, k)
            lp[f"b_{d}"] = b_ih + b_hh
        layers.append(lp)
    key, k1, k2 = jax.random.split(key, 3)
    w_last = jax.random.uniform(k1, (cdim, hdim), jnp.float32, -k, k)
    b_last = jax.random.uniform(k2, (1, hdim), jnp.float32, -k, k)
    return {"layers": layers, "w_last": w_last, "b_last": b_last}


# ----------------------------------------------------------------------------
# Pure numpy reference (mirrors pack_padded / bidirectional LSTM semantics).
# ----------------------------------------------------------------------------
def _ref_forward(xs, ilens, params):
    def sigmoid(z):
        return 1.0 / (1.0 + np.exp(-z))

    def run_dir(seq, wih, whh, b):
        C = whh.shape[0]
        h = np.zeros(C, np.float32)
        c = np.zeros(C, np.float32)
        outs = []
        for t in range(seq.shape[0]):
            g = seq[t] @ wih + h @ whh + b[0]
            i = sigmoid(g[0 * C:1 * C])
            f = sigmoid(g[1 * C:2 * C])
            gg = np.tanh(g[2 * C:3 * C])
            o = sigmoid(g[3 * C:4 * C])
            c = f * c + i * gg
            h = o * np.tanh(c)
            outs.append(h.copy())
        return np.stack(outs) if outs else np.zeros((0, C), np.float32)

    B, T, _ = xs.shape
    x = np.asarray(xs, np.float32)
    for lp in params["layers"]:
        C = lp["whh_f"].shape[0]
        y = np.zeros((B, T, C), np.float32)
        for b in range(B):
            L = int(ilens[b])
            seq = x[b, :L]
            of = run_dir(seq, lp["wih_f"], lp["whh_f"], lp["b_f"])
            ob = run_dir(seq[::-1], lp["wih_b"], lp["whh_b"], lp["b_b"])[::-1]
            y[b, :L] = of + ob
        x = y
    proj = np.tanh(x.reshape(-1, x.shape[-1]) @ params["w_last"] + params["b_last"][0])
    return proj.reshape(B, T, -1)


if __name__ == "__main__":
    B, T, idim, elayers, cdim, hdim = 2, 8, 32, 2, 32, 16

    key = jax.random.PRNGKey(0)
    kx, kp = jax.random.split(key)
    xs_pad = jax.random.normal(kx, (B, T, idim), jnp.float32)
    # pack_padded_sequence expects lengths sorted descending; max(ilens) == Tmax.
    ilens = jnp.array([8, 6], jnp.int32)
    params = init_params(kp, idim, elayers, cdim, hdim)

    xs_out, olens, states = jax.jit(rnn_forward)(xs_pad, ilens, params)
    jax.block_until_ready(xs_out)

    assert xs_out.shape == (B, T, hdim)
    assert olens.shape == (B,)
    assert len(states) == elayers and states[0][0].shape == (2, B, cdim)

    ref = _ref_forward(np.asarray(xs_pad), np.asarray(ilens),
                       jax.tree_util.tree_map(np.asarray, params))
    # Kernel uses default MXU precision (single-pass bf16 multiplies with f32
    # accumulation) while the reference is full-f32 numpy -> relaxed tolerance.
    np.testing.assert_allclose(np.asarray(xs_out), ref, atol=2e-2, rtol=2e-2)

    print("KERNEL_OK")
</pallas_src>

<mosaic_0001>
module attributes {stable_mosaic.version = 11 : i64} {
  func.func @_gemm_bias_kernel(%arg0: i32, %arg1: memref<64x128xf32, #tpu.memory_space<vmem>>, %arg2: memref<128x512xf32, #tpu.memory_space<vmem>>, %arg3: memref<1x512xf32, #tpu.memory_space<vmem>>, %arg4: memref<64x512xf32, #tpu.memory_space<vmem>>) attributes {dimension_semantics = [#tpu.dimension_semantics<parallel>], iteration_bounds = array<i64: 1>, scalar_prefetch = 0 : i64, scratch_operands = 0 : i64, tpu.core_type = #tpu.core_type<tc>, window_params = [{transform_indices = @transform_0, window_bounds = array<i64: 64, 128>}, {pipeline_mode = #tpu.pipeline_mode<synchronous>, transform_indices = @transform_1, window_bounds = array<i64: 128, 512>}, {pipeline_mode = #tpu.pipeline_mode<synchronous>, transform_indices = @transform_2, window_bounds = array<i64: 1, 512>}, {transform_indices = @transform_3, window_bounds = array<i64: 64, 512>}]} {
    %c0 = arith.constant 0 : index
    %c0_0 = arith.constant 0 : index
    %0 = vector.load %arg1[%c0, %c0_0] : memref<64x128xf32, #tpu.memory_space<vmem>>, vector<64x128xf32>
    %c0_1 = arith.constant 0 : index
    %c0_2 = arith.constant 0 : index
    %1 = vector.load %arg2[%c0_1, %c0_2] : memref<128x512xf32, #tpu.memory_space<vmem>>, vector<128x512xf32>
    %cst = arith.constant dense<0.000000e+00> : vector<64x512xf32>
    %2 = tpu.matmul %0, %1, %cst {dimension_numbers = #tpu.dot_dimension_numbers<[1], [0], [0], [1], [0, 0, 1, 1], [], []>} : vector<64x128xf32>, vector<128x512xf32>, vector<64x512xf32> -> vector<64x512xf32>
    %c0_3 = arith.constant 0 : index
    %c0_4 = arith.constant 0 : index
    %3 = vector.load %arg3[%c0_3, %c0_4] : memref<1x512xf32, #tpu.memory_space<vmem>>, vector<1x512xf32>
    %4 = vector.broadcast %3 : vector<1x512xf32> to vector<64x512xf32>
    %5 = arith.addf %2, %4 : vector<64x512xf32>
    %c0_5 = arith.constant 0 : index
    %c0_6 = arith.constant 0 : index
    %6 = vector.load %arg4[%c0_5, %c0_6] : memref<64x512xf32, #tpu.memory_space<vmem>>, vector<64x512xf32>
    tpu.vector_store %arg4[%c0_5, %c0_6], %5 {strides = array<i32>} : memref<64x512xf32, #tpu.memory_space<vmem>>, vector<64x512xf32>,
    return
  }
  func.func @transform_0(%arg0: i32) -> (i32, i32) {
    %c0_i32 = arith.constant 0 : i32
    %c0_i32_0 = arith.constant 0 : i32
    return %arg0, %c0_i32 : i32, i32
  }
  func.func @transform_1(%arg0: i32) -> (i32, i32) {
    %c0_i32 = arith.constant 0 : i32
    %c0_i32_0 = arith.constant 0 : i32
    %c0_i32_1 = arith.constant 0 : i32
    return %c0_i32, %c0_i32_0 : i32, i32
  }
  func.func @transform_2(%arg0: i32) -> (i32, i32) {
    %c0_i32 = arith.constant 0 : i32
    %c0_i32_0 = arith.constant 0 : i32
    %c0_i32_1 = arith.constant 0 : i32
    return %c0_i32, %c0_i32_0 : i32, i32
  }
  func.func @transform_3(%arg0: i32) -> (i32, i32) {
    %c0_i32 = arith.constant 0 : i32
    %c0_i32_0 = arith.constant 0 : i32
    return %arg0, %c0_i32 : i32, i32
  }
}

module attributes {stable_mosaic.version = 11 : i64} {
  func.func @_bilstm_rec_kernel(%arg0: memref<8x8x512xf32, #tpu.memory_space<vmem>>, %arg1: memref<8x8x512xf32, #tpu.memory_space<vmem>>, %arg2: memref<8x8x1xf32, #tpu.memory_space<vmem>>, %arg3: memref<128x512xf32, #tpu.memory_space<vmem>>, %arg4: memref<128x512xf32, #tpu.memory_space<vmem>>, %arg5: memref<8x8x128xf32, #tpu.memory_space<vmem>>, %arg6: memref<2x8x128xf32, #tpu.memory_space<vmem>>, %arg7: memref<2x8x128xf32, #tpu.memory_space<vmem>>, %arg8: memref<8x8x128xf32, #tpu.memory_space<vmem>>) attributes {dimension_semantics = [], scalar_prefetch = 0 : i64, scratch_operands = 1 : i64, tpu.core_type = #tpu.core_type<tc>} {
    %c0 = arith.constant 0 : index
    %c0_0 = arith.constant 0 : index
    %0 = vector.load %arg3[%c0, %c0_0] : memref<128x512xf32, #tpu.memory_space<vmem>>, vector<128x512xf32>
    %c0_1 = arith.constant 0 : index
    %c0_2 = arith.constant 0 : index
    %1 = vector.load %arg4[%c0_1, %c0_2] : memref<128x512xf32, #tpu.memory_space<vmem>>, vector<128x512xf32>
    %cst = arith.constant 0.000000e+00 : f32
    %2 = vector.broadcast %cst : f32 to vector<8x128xf32>
    %c0_i32 = arith.constant 0 : i32
    %c8_i32 = arith.constant 8 : i32
    %3 = arith.addi %c0_i32, %c8_i32 : i32
    %c1_i32 = arith.constant 1 : i32
    %4:4 = scf.for %arg9 = %c0_i32 to %3 step %c1_i32 iter_args(%arg10 = %2, %arg11 = %2, %arg12 = %2, %arg13 = %2) -> (vector<8x128xf32>, vector<8x128xf32>, vector<8x128xf32>, vector<8x128xf32>)  : i32 {
      %c7_i32 = arith.constant 7 : i32
      %21 = arith.subi %c7_i32, %arg9 : i32
      %22 = arith.index_cast %arg9 : i32 to index
      %c0_24 = arith.constant 0 : index
      %c0_25 = arith.constant 0 : index
      %23 = vector.load %arg0[%22, %c0_24, %c0_25] : memref<8x8x512xf32, #tpu.memory_space<vmem>>, vector<1x8x512xf32>
      %24 = vector.shape_cast %23 : vector<1x8x512xf32> to vector<8x512xf32>
      %cst_26 = arith.constant dense<0.000000e+00> : vector<8x512xf32>
      %25 = tpu.matmul %arg10, %0, %cst_26 {dimension_numbers = #tpu.dot_dimension_numbers<[1], [0], [0], [1], [0, 0, 1, 1], [], []>} : vector<8x128xf32>, vector<128x512xf32>, vector<8x512xf32> -> vector<8x512xf32>
      %26 = arith.addf %24, %25 : vector<8x512xf32>
      %27 = arith.index_cast %21 : i32 to index
      %c0_27 = arith.constant 0 : index
      %c0_28 = arith.constant 0 : index
      %28 = vector.load %arg1[%27, %c0_27, %c0_28] : memref<8x8x512xf32, #tpu.memory_space<vmem>>, vector<1x8x512xf32>
      %29 = vector.shape_cast %28 : vector<1x8x512xf32> to vector<8x512xf32>
      %cst_29 = arith.constant dense<0.000000e+00> : vector<8x512xf32>
      %30 = tpu.matmul %arg12, %1, %cst_29 {dimension_numbers = #tpu.dot_dimension_numbers<[1], [0], [0], [1], [0, 0, 1, 1], [], []>} : vector<8x128xf32>, vector<128x512xf32>, vector<8x512xf32> -> vector<8x512xf32>
      %31 = arith.addf %29, %30 : vector<8x512xf32>
      %32 = vector.extract_strided_slice %26 {offsets = [0, 0], sizes = [8, 128], strides = [1, 1]} : vector<8x512xf32> to vector<8x128xf32>
      %33 = arith.negf %32 : vector<8x128xf32>
      %34 = math.exp %33 : vector<8x128xf32>
      %cst_30 = arith.constant 1.000000e+00 : f32
      %35 = vector.broadcast %cst_30 : f32 to vector<8x128xf32>
      %36 = arith.addf %35, %34 : vector<8x128xf32>
      %37 = arith.divf %35, %36 : vector<8x128xf32>
      %38 = vector.extract_strided_slice %26 {offsets = [0, 128], sizes = [8, 128], strides = [1, 1]} : vector<8x512xf32> to vector<8x128xf32>
      %39 = arith.negf %38 : vector<8x128xf32>
      %40 = math.exp %39 : vector<8x128xf32>
      %cst_31 = arith.constant 1.000000e+00 : f32
      %41 = vector.broadcast %cst_31 : f32 to vector<8x128xf32>
      %42 = arith.addf %41, %40 : vector<8x128xf32>
      %43 = arith.divf %41, %42 : vector<8x128xf32>
      %44 = vector.extract_strided_slice %26 {offsets = [0, 256], sizes = [8, 128], strides = [1, 1]} : vector<8x512xf32> to vector<8x128xf32>
      %45 = math.tanh %44 : vector<8x128xf32>
      %46 = vector.extract_strided_slice %26 {offsets = [0, 384], sizes = [8, 128], strides = [1, 1]} : vector<8x512xf32> to vector<8x128xf32>
      %47 = arith.negf %46 : vector<8x128xf32>
      %48 = math.exp %47 : vector<8x128xf32>
      %cst_32 = arith.constant 1.000000e+00 : f32
      %49 = vector.broadcast %cst_32 : f32 to vector<8x128xf32>
      %50 = arith.addf %49, %48 : vector<8x128xf32>
      %51 = arith.divf %49, %50 : vector<8x128xf32>
      %52 = arith.mulf %43, %arg11 : vector<8x128xf32>
      %53 = arith.mulf %37, %45 : vector<8x128xf32>
      %54 = arith.addf %52, %53 : vector<8x128xf32>
      %55 = math.tanh %54 : vector<8x128xf32>
      %56 = arith.mulf %51, %55 : vector<8x128xf32>
      %57 = vector.extract_strided_slice %31 {offsets = [0, 0], sizes = [8, 128], strides = [1, 1]} : vector<8x512xf32> to vector<8x128xf32>
      %58 = arith.negf %57 : vector<8x128xf32>
      %59 = math.exp %58 : vector<8x128xf32>
      %cst_33 = arith.constant 1.000000e+00 : f32
      %60 = vector.broadcast %cst_33 : f32 to vector<8x128xf32>
      %61 = arith.addf %60, %59 : vector<8x128xf32>
      %62 = arith.divf %60, %61 : vector<8x128xf32>
      %63 = vector.extract_strided_slice %31 {offsets = [0, 128], sizes = [8, 128], strides = [1, 1]} : vector<8x512xf32> to vector<8x128xf32>
      %64 = arith.negf %63 : vector<8x128xf32>
      %65 = math.exp %64 : vector<8x128xf32>
      %cst_34 = arith.constant 1.000000e+00 : f32
      %66 = vector.broadcast %cst_34 : f32 to vector<8x128xf32>
      %67 = arith.addf %66, %65 : vector<8x128xf32>
      %68 = arith.divf %66, %67 : vector<8x128xf32>
      %69 = vector.extract_strided_slice %31 {offsets = [0, 256], sizes = [8, 128], strides = [1, 1]} : vector<8x512xf32> to vector<8x128xf32>
      %70 = math.tanh %69 : vector<8x128xf32>
      %71 = vector.extract_strided_slice %31 {offsets = [0, 384], sizes = [8, 128], strides = [1, 1]} : vector<8x512xf32> to vector<8x128xf32>
      %72 = arith.negf %71 : vector<8x128xf32>
      %73 = math.exp %72 : vector<8x128xf32>
      %cst_35 = arith.constant 1.000000e+00 : f32
      %74 = vector.broadcast %cst_35 : f32 to vector<8x128xf32>
      %75 = arith.addf %74, %73 : vector<8x128xf32>
      %76 = arith.divf %74, %75 : vector<8x128xf32>
      %77 = arith.mulf %68, %arg13 : vector<8x128xf32>
      %78 = arith.mulf %62, %70 : vector<8x128xf32>
      %79 = arith.addf %77, %78 : vector<8x128xf32>
      %80 = math.tanh %79 : vector<8x128xf32>
      %81 = arith.mulf %76, %80 : vector<8x128xf32>
      %82 = arith.index_cast %arg9 : i32 to index
      %c0_36 = arith.constant 0 : index
      %c0_37 = arith.constant 0 : index
      %83 = vector.load %arg2[%82, %c0_36, %c0_37] : memref<8x8x1xf32, #tpu.memory_space<vmem>>, vector<1x8x1xf32>
      %84 = vector.shape_cast %83 : vector<1x8x1xf32> to vector<8x1xf32>
      %85 = arith.index_cast %21 : i32 to index
      %c0_38 = arith.constant 0 : index
      %c0_39 = arith.constant 0 : index
      %86 = vector.load %arg2[%85, %c0_38, %c0_39] : memref<8x8x1xf32, #tpu.memory_space<vmem>>, vector<1x8x1xf32>
      %87 = vector.shape_cast %86 : vector<1x8x1xf32> to vector<8x1xf32>
      %88 = vector.broadcast %84 : vector<8x1xf32> to vector<8x128xf32>
      %89 = arith.mulf %88, %56 : vector<8x128xf32>
      %cst_40 = arith.constant 1.000000e+00 : f32
      %90 = vector.broadcast %cst_40 : f32 to vector<8x1xf32>
      %91 = arith.subf %90, %84 : vector<8x1xf32>
      %92 = vector.broadcast %91 : vector<8x1xf32> to vector<8x128xf32>
      %93 = arith.mulf %92, %arg10 : vector<8x128xf32>
      %94 = arith.addf %89, %93 : vector<8x128xf32>
      %95 = vector.broadcast %84 : vector<8x1xf32> to vector<8x128xf32>
      %96 = arith.mulf %95, %54 : vector<8x128xf32>
      %cst_41 = arith.constant 1.000000e+00 : f32
      %97 = vector.broadcast %cst_41 : f32 to vector<8x1xf32>
      %98 = arith.subf %97, %84 : vector<8x1xf32>
      %99 = vector.broadcast %98 : vector<8x1xf32> to vector<8x128xf32>
      %100 = arith.mulf %99, %arg11 : vector<8x128xf32>
      %101 = arith.addf %96, %100 : vector<8x128xf32>
      %102 = vector.broadcast %87 : vector<8x1xf32> to vector<8x128xf32>
      %103 = arith.mulf %102, %81 : vector<8x128xf32>
      %cst_42 = arith.constant 1.000000e+00 : f32
      %104 = vector.broadcast %cst_42 : f32 to vector<8x1xf32>
      %105 = arith.subf %104, %87 : vector<8x1xf32>
      %106 = vector.broadcast %105 : vector<8x1xf32> to vector<8x128xf32>
      %107 = arith.mulf %106, %arg12 : vector<8x128xf32>
      %108 = arith.addf %103, %107 : vector<8x128xf32>
      %109 = vector.broadcast %87 : vector<8x1xf32> to vector<8x128xf32>
      %110 = arith.mulf %109, %79 : vector<8x128xf32>
      %cst_43 = arith.constant 1.000000e+00 : f32
      %111 = vector.broadcast %cst_43 : f32 to vector<8x1xf32>
      %112 = arith.subf %111, %87 : vector<8x1xf32>
      %113 = vector.broadcast %112 : vector<8x1xf32> to vector<8x128xf32>
      %114 = arith.mulf %113, %arg13 : vector<8x128xf32>
      %115 = arith.addf %110, %114 : vector<8x128xf32>
      %116 = vector.broadcast %84 : vector<8x1xf32> to vector<8x128xf32>
      %117 = arith.mulf %116, %56 : vector<8x128xf32>
      %118 = arith.index_cast %arg9 : i32 to index
      %c0_44 = arith.constant 0 : index
      %c0_45 = arith.constant 0 : index
      %119 = vector.load %arg5[%118, %c0_44, %c0_45] : memref<8x8x128xf32, #tpu.memory_space<vmem>>, vector<1x8x128xf32>
      %120 = vector.shape_cast %119 : vector<1x8x128xf32> to vector<8x128xf32>
      %121 = vector.shape_cast %117 : vector<8x128xf32> to vector<1x8x128xf32>
      tpu.vector_store %arg5[%118, %c0_44, %c0_45], %121 {strides = array<i32>} : memref<8x8x128xf32, #tpu.memory_space<vmem>>, vector<1x8x128xf32>,
      %122 = vector.broadcast %87 : vector<8x1xf32> to vector<8x128xf32>
      %123 = arith.mulf %122, %81 : vector<8x128xf32>
      %124 = arith.index_cast %21 : i32 to index
      %c0_46 = arith.constant 0 : index
      %c0_47 = arith.constant 0 : index
      %125 = vector.load %arg8[%124, %c0_46, %c0_47] : memref<8x8x128xf32, #tpu.memory_space<vmem>>, vector<1x8x128xf32>
      %126 = vector.shape_cast %125 : vector<1x8x128xf32> to vector<8x128xf32>
      %127 = vector.shape_cast %123 : vector<8x128xf32> to vector<1x8x128xf32>
      tpu.vector_store %arg8[%124, %c0_46, %c0_47], %127 {strides = array<i32>} : memref<8x8x128xf32, #tpu.memory_space<vmem>>, vector<1x8x128xf32>,
      scf.yield %94, %101, %108, %115 : vector<8x128xf32>, vector<8x128xf32>, vector<8x128xf32>, vector<8x128xf32>
    }
    %c8_i32_3 = arith.constant 8 : i32
    %c0_4 = arith.constant 0 : index
    %c0_5 = arith.constant 0 : index
    %c0_6 = arith.constant 0 : index
    %5 = vector.load %arg5[%c0_4, %c0_5, %c0_6] : memref<8x8x128xf32, #tpu.memory_space<vmem>>, vector<8x8x128xf32>
    %c0_7 = arith.constant 0 : index
    %c0_8 = arith.constant 0 : index
    %c0_9 = arith.constant 0 : index
    %6 = vector.load %arg8[%c0_7, %c0_8, %c0_9] : memref<8x8x128xf32, #tpu.memory_space<vmem>>, vector<8x8x128xf32>
    %7 = arith.addf %5, %6 : vector<8x8x128xf32>
    %c0_10 = arith.constant 0 : index
    %c0_11 = arith.constant 0 : index
    %c0_12 = arith.constant 0 : index
    %8 = vector.load %arg5[%c0_10, %c0_11, %c0_12] : memref<8x8x128xf32, #tpu.memory_space<vmem>>, vector<8x8x128xf32>
    tpu.vector_store %arg5[%c0_10, %c0_11, %c0_12], %7 {strides = array<i32>} : memref<8x8x128xf32, #tpu.memory_space<vmem>>, vector<8x8x128xf32>,
    %c0_13 = arith.constant 0 : index
    %c0_14 = arith.constant 0 : index
    %c0_15 = arith.constant 0 : index
    %9 = vector.load %arg6[%c0_13, %c0_14, %c0_15] : memref<2x8x128xf32, #tpu.memory_space<vmem>>, vector<1x8x128xf32>
    %10 = vector.shape_cast %9 : vector<1x8x128xf32> to vector<8x128xf32>
    %11 = vector.shape_cast %4#0 : vector<8x128xf32> to vector<1x8x128xf32>
    tpu.vector_store %arg6[%c0_13, %c0_14, %c0_15], %11 {strides = array<i32>} : memref<2x8x128xf32, #tpu.memory_space<vmem>>, vector<1x8x128xf32>,
    %c1 = arith.constant 1 : index
    %c0_16 = arith.constant 0 : index
    %c0_17 = arith.constant 0 : index
    %12 = vector.load %arg6[%c1, %c0_16, %c0_17] : memref<2x8x128xf32, #tpu.memory_space<vmem>>, vector<1x8x128xf32>
    %13 = vector.shape_cast %12 : vector<1x8x128xf32> to vector<8x128xf32>
    %14 = vector.shape_cast %4#2 : vector<8x128xf32> to vector<1x8x128xf32>
    tpu.vector_store %arg6[%c1, %c0_16, %c0_17], %14 {strides = array<i32>} : memref<2x8x128xf32, #tpu.memory_space<vmem>>, vector<1x8x128xf32>,
    %c0_18 = arith.constant 0 : index
    %c0_19 = arith.constant 0 : index
    %c0_20 = arith.constant 0 : index
    %15 = vector.load %arg7[%c0_18, %c0_19, %c0_20] : memref<2x8x128xf32, #tpu.memory_space<vmem>>, vector<1x8x128xf32>
    %16 = vector.shape_cast %15 : vector<1x8x128xf32> to vector<8x128xf32>
    %17 = vector.shape_cast %4#1 : vector<8x128xf32> to vector<1x8x128xf32>
    tpu.vector_store %arg7[%c0_18, %c0_19, %c0_20], %17 {strides = array<i32>} : memref<2x8x128xf32, #tpu.memory_space<vmem>>, vector<1x8x128xf32>,
    %c1_21 = arith.constant 1 : index
    %c0_22 = arith.constant 0 : index
    %c0_23 = arith.constant 0 : index
    %18 = vector.load %arg7[%c1_21, %c0_22, %c0_23] : memref<2x8x128xf32, #tpu.memory_space<vmem>>, vector<1x8x128xf32>
    %19 = vector.shape_cast %18 : vector<1x8x128xf32> to vector<8x128xf32>
    %20 = vector.shape_cast %4#3 : vector<8x128xf32> to vector<1x8x128xf32>
    tpu.vector_store %arg7[%c1_21, %c0_22, %c0_23], %20 {strides = array<i32>} : memref<2x8x128xf32, #tpu.memory_space<vmem>>, vector<1x8x128xf32>,
    return
  }
}

module attributes {stable_mosaic.version = 11 : i64} {
  func.func @_gemm_bias_kernel(%arg0: i32, %arg1: memref<64x128xf32, #tpu.memory_space<vmem>>, %arg2: memref<128x128xf32, #tpu.memory_space<vmem>>, %arg3: memref<1x128xf32, #tpu.memory_space<vmem>>, %arg4: memref<64x128xf32, #tpu.memory_space<vmem>>) attributes {dimension_semantics = [#tpu.dimension_semantics<parallel>], iteration_bounds = array<i64: 1>, scalar_prefetch = 0 : i64, scratch_operands = 0 : i64, tpu.core_type = #tpu.core_type<tc>, window_params = [{transform_indices = @transform_0, window_bounds = array<i64: 64, 128>}, {pipeline_mode = #tpu.pipeline_mode<synchronous>, transform_indices = @transform_1, window_bounds = array<i64: 128, 128>}, {pipeline_mode = #tpu.pipeline_mode<synchronous>, transform_indices = @transform_2, window_bounds = array<i64: 1, 128>}, {transform_indices = @transform_3, window_bounds = array<i64: 64, 128>}]} {
    %c0 = arith.constant 0 : index
    %c0_0 = arith.constant 0 : index
    %0 = vector.load %arg1[%c0, %c0_0] : memref<64x128xf32, #tpu.memory_space<vmem>>, vector<64x128xf32>
    %c0_1 = arith.constant 0 : index
    %c0_2 = arith.constant 0 : index
    %1 = vector.load %arg2[%c0_1, %c0_2] : memref<128x128xf32, #tpu.memory_space<vmem>>, vector<128x128xf32>
    %cst = arith.constant dense<0.000000e+00> : vector<64x128xf32>
    %2 = tpu.matmul %0, %1, %cst {dimension_numbers = #tpu.dot_dimension_numbers<[1], [0], [0], [1], [0, 0, 1, 1], [], []>} : vector<64x128xf32>, vector<128x128xf32>, vector<64x128xf32> -> vector<64x128xf32>
    %c0_3 = arith.constant 0 : index
    %c0_4 = arith.constant 0 : index
    %3 = vector.load %arg3[%c0_3, %c0_4] : memref<1x128xf32, #tpu.memory_space<vmem>>, vector<1x128xf32>
    %4 = vector.broadcast %3 : vector<1x128xf32> to vector<64x128xf32>
    %5 = arith.addf %2, %4 : vector<64x128xf32>
    %6 = math.tanh %5 : vector<64x128xf32>
    %c0_5 = arith.constant 0 : index
    %c0_6 = arith.constant 0 : index
    %7 = vector.load %arg4[%c0_5, %c0_6] : memref<64x128xf32, #tpu.memory_space<vmem>>, vector<64x128xf32>
    tpu.vector_store %arg4[%c0_5, %c0_6], %6 {strides = array<i32>} : memref<64x128xf32, #tpu.memory_space<vmem>>, vector<64x128xf32>,
    return
  }
  func.func @transform_0(%arg0: i32) -> (i32, i32) {
    %c0_i32 = arith.constant 0 : i32
    %c0_i32_0 = arith.constant 0 : i32
    return %arg0, %c0_i32 : i32, i32
  }
  func.func @transform_1(%arg0: i32) -> (i32, i32) {
    %c0_i32 = arith.constant 0 : i32
    %c0_i32_0 = arith.constant 0 : i32
    %c0_i32_1 = arith.constant 0 : i32
    return %c0_i32, %c0_i32_0 : i32, i32
  }
  func.func @transform_2(%arg0: i32) -> (i32, i32) {
    %c0_i32 = arith.constant 0 : i32
    %c0_i32_0 = arith.constant 0 : i32
    %c0_i32_1 = arith.constant 0 : i32
    return %c0_i32, %c0_i32_0 : i32, i32
  }
  func.func @transform_3(%arg0: i32) -> (i32, i32) {
    %c0_i32 = arith.constant 0 : i32
    %c0_i32_0 = arith.constant 0 : i32
    return %arg0, %c0_i32 : i32, i32
  }
}

</mosaic_0001>

<llo_original>
// kernel: rnn_forward.13
$region0: #{rnn_forward.13}
  #allocation0 [shape = 'u32[]', space=smem, size = 0x4, offset = 0x4, fixed_abs, tag = 'smem constant byte address 0x4 - core index']
  #allocation1 [shape = 'u32[72,128]{1,0:T(1,128)}', space=vmem, size = 0x9000, scoped, tag = 'internal scratch']
  %s0 = inlined_call_operand.vmem [shape: f32[64,128], index: 0, kind: input, shape index: {}]
  %s1 = inlined_call_operand.vmem [shape: f32[128,128], index: 1, kind: input, shape index: {}]
  %s2 = inlined_call_operand.vmem [shape: f32[1,128], index: 2, kind: input, shape index: {}]
  %s3 = inlined_call_operand.vmem [shape: f32[64,128], index: 3, kind: output, shape index: {}]
  %s4 = sld [smem:[#allocation0]]
  $region22: #{rnn_forward.13} parent=0
    _
  %s6 = ssub.s32 1, %s4
  %s7 = scalar_select 0, %s6, %s4
  // Predicated region
  $region2: #{rnn_forward.13} parent=0 // pred_check
    _
  $region3: #{rnn_forward.13} parent=0 // pred_check_branch
    %9 = sbr.rel (0) target = $region5
  $region4: #{rnn_forward.13} parent=0 // pred_region
    _
  $region5: #{rnn_forward.13} parent=0 // pred_fallthru
    _
  // Predicated region
  $region6: #{rnn_forward.13} parent=0 // pred_check
    _
  $region7: #{rnn_forward.13} parent=0 // pred_check_branch
    %11 = sbr.rel (0) target = $region9
  $region8: #{rnn_forward.13} parent=0 // pred_region
    _
  $region9: #{rnn_forward.13} parent=0 // pred_fallthru
    _
  // Predicated region
  $region10: #{rnn_forward.13} parent=0 // pred_check
    _
  $region11: #{rnn_forward.13} parent=0 // pred_check_branch
    %13 = sbr.rel (0) target = $region13
  $region12: #{rnn_forward.13} parent=0 // pred_region
    _
  $region13: #{rnn_forward.13} parent=0 // pred_fallthru
    _
  %v14 = vld [vmem:[%s0] sm:$0xff]
  %v15 = vld [vmem:[%s0 + $0x8] sm:$0xff]
  %v16 = vld [vmem:[%s0 + $0x10] sm:$0xff]
  %v17 = vld [vmem:[%s0 + $0x18] sm:$0xff]
  %v18 = vld [vmem:[%s0 + $0x20] sm:$0xff]
  %v19 = vld [vmem:[%s0 + $0x28] sm:$0xff]
  %v20 = vld [vmem:[%s0 + $0x30] sm:$0xff]
  %v21 = vld [vmem:[%s0 + $0x38] sm:$0xff]
  %v22 = vld [vmem:[%s1] sm:$0xff]
  %v23 = vld [vmem:[%s1 + $0x8] sm:$0xff]
  %v24 = vld [vmem:[%s1 + $0x10] sm:$0xff]
  %v25 = vld [vmem:[%s1 + $0x18] sm:$0xff]
  %v26 = vld [vmem:[%s1 + $0x20] sm:$0xff]
  %v27 = vld [vmem:[%s1 + $0x28] sm:$0xff]
  %v28 = vld [vmem:[%s1 + $0x30] sm:$0xff]
  %v29 = vld [vmem:[%s1 + $0x38] sm:$0xff]
  %v30 = vld [vmem:[%s1 + $0x40] sm:$0xff]
  %v31 = vld [vmem:[%s1 + $0x48] sm:$0xff]
  %v32 = vld [vmem:[%s1 + $0x50] sm:$0xff]
  %v33 = vld [vmem:[%s1 + $0x58] sm:$0xff]
  %v34 = vld [vmem:[%s1 + $0x60] sm:$0xff]
  %v35 = vld [vmem:[%s1 + $0x68] sm:$0xff]
  %v36 = vld [vmem:[%s1 + $0x70] sm:$0xff]
  %v37 = vld [vmem:[%s1 + $0x78] sm:$0xff]
  %v38 = vld [vmem:[%s2] sm:$0x1]
  %v40 = vperm.slane %v38, 0
  %42 = vmatpush.msra.mxu0 %v37
  %43 = vmatpush.msra.mxu0 %v36
  %44 = vmatpush.msra.mxu0 %v35
  %45 = vmatpush.msra.mxu0 %v34
  %46 = vmatpush.msra.mxu0 %v33
  %47 = vmatpush.msra.mxu0 %v32
  %48 = vmatpush.msra.mxu0 %v31
  %49 = vmatpush.msra.mxu0 %v30
  %50 = vmatpush.msra.mxu0 %v29
  %51 = vmatpush.msra.mxu0 %v28
  %52 = vmatpush.msra.mxu0 %v27
  %53 = vmatpush.msra.mxu0 %v26
  %54 = vmatpush.msra.mxu0 %v25
  %55 = vmatpush.msra.mxu0 %v24
  %56 = vmatpush.msra.mxu0 %v23
  %57 = vmatpush.msra.mxu0 %v22
  %58 = vmatmul.f32.gmra.mxu0 %v14
  %v59 = vpop.f32.mrf.mxu0
  %v60 = vadd.f32 %v40, %v59
  %61 = vmatmul.f32.gmra.mxu0 %v15
  %v62 = vpop.f32.mrf.mxu0
  %v63 = vadd.f32 %v40, %v62
  %64 = vmatmul.f32.gmra.mxu0 %v16
  %v65 = vpop.f32.mrf.mxu0
  %v66 = vadd.f32 %v40, %v65
  %67 = vmatmul.f32.gmra.mxu0 %v17
  %v68 = vpop.f32.mrf.mxu0
  %v69 = vadd.f32 %v40, %v68
  %70 = vmatmul.f32.gmra.mxu0 %v18
  %v71 = vpop.f32.mrf.mxu0
  %v72 = vadd.f32 %v40, %v71
  %73 = vmatmul.f32.gmra.mxu0 %v19
  %v74 = vpop.f32.mrf.mxu0
  %v75 = vadd.f32 %v40, %v74
  %76 = vmatmul.f32.gmra.mxu0 %v20
  %v77 = vpop.f32.mrf.mxu0
  %v78 = vadd.f32 %v40, %v77
  %79 = vmatmul.f32.gmra.mxu0 %v21
  %v80 = vpop.f32.mrf.mxu0
  %v81 = vadd.f32 %v40, %v80
  %82 = vdwg.mxu0
  %v83 = vtanh.pop %v60
  %v84 = vtanh.pop %v63
  %v85 = vtanh.pop %v66
  %v86 = vtanh.pop %v69
  %v87 = vtanh.pop %v72
  %v88 = vtanh.pop %v75
  %v89 = vtanh.pop %v78
  %v90 = vtanh.pop %v81
  %91 = vst [vmem:[%s3] sm:$0xff] %v83
  %92 = vst [vmem:[%s3 + $0x8] sm:$0xff] %v84
  %93 = vst [vmem:[%s3 + $0x10] sm:$0xff] %v85
  %94 = vst [vmem:[%s3 + $0x18] sm:$0xff] %v86
  %95 = vst [vmem:[%s3 + $0x20] sm:$0xff] %v87
  %96 = vst [vmem:[%s3 + $0x28] sm:$0xff] %v88
  %97 = vst [vmem:[%s3 + $0x30] sm:$0xff] %v89
  %98 = vst [vmem:[%s3 + $0x38] sm:$0xff] %v90
  // Predicated region
  $region14: #{rnn_forward.13} parent=0 // pred_check
    _
  $region15: #{rnn_forward.13} parent=0 // pred_check_branch
    %100 = sbr.rel (0) target = $region17
  $region16: #{rnn_forward.13} parent=0 // pred_region
    _
  $region17: #{rnn_forward.13} parent=0 // pred_fallthru
    _
  // Predicated region
  $region18: #{rnn_forward.13} parent=0 // pred_check
    _
  $region19: #{rnn_forward.13} parent=0 // pred_check_branch
    %102 = sbr.rel (0) target = $region21
  $region20: #{rnn_forward.13} parent=0 // pred_region
    _
  $region21: #{rnn_forward.13} parent=0 // pred_fallthru
    _

// kernel: rnn_forward.7
$region0: #{rnn_forward.7}
  #allocation0 [shape = 'u32[]', space=smem, size = 0x4, offset = 0x4, fixed_abs, tag = 'smem constant byte address 0x4 - core index']
  #allocation1 [shape = 'u32[72,128]{1,0:T(1,128)}', space=vmem, size = 0x9000, scoped, tag = 'internal scratch']
  %s0 = inlined_call_operand.vmem [shape: f32[64,128], index: 0, kind: input, shape index: {}]
  %s1 = inlined_call_operand.vmem [shape: f32[128,512], index: 1, kind: input, shape index: {}]
  %s2 = inlined_call_operand.vmem [shape: f32[1,512], index: 2, kind: input, shape index: {}]
  %s3 = inlined_call_operand.vmem [shape: f32[64,512], index: 3, kind: output, shape index: {}]
  %s4 = sld [smem:[#allocation0]]
  $region22: #{rnn_forward.7} parent=0
    _
  %s6 = ssub.s32 1, %s4
  %s7 = scalar_select 0, %s6, %s4
  // Predicated region
  $region2: #{rnn_forward.7} parent=0 // pred_check
    _
  $region3: #{rnn_forward.7} parent=0 // pred_check_branch
    %9 = sbr.rel (0) target = $region5
  $region4: #{rnn_forward.7} parent=0 // pred_region
    _
  $region5: #{rnn_forward.7} parent=0 // pred_fallthru
    _
  // Predicated region
  $region6: #{rnn_forward.7} parent=0 // pred_check
    _
  $region7: #{rnn_forward.7} parent=0 // pred_check_branch
    %11 = sbr.rel (0) target = $region9
  $region8: #{rnn_forward.7} parent=0 // pred_region
    _
  $region9: #{rnn_forward.7} parent=0 // pred_fallthru
    _
  // Predicated region
  $region10: #{rnn_forward.7} parent=0 // pred_check
    _
  $region11: #{rnn_forward.7} parent=0 // pred_check_branch
    %13 = sbr.rel (0) target = $region13
  $region12: #{rnn_forward.7} parent=0 // pred_region
    _
  $region13: #{rnn_forward.7} parent=0 // pred_fallthru
    _
  %v14 = vld [vmem:[%s0] sm:$0xff]
  %v15 = vld [vmem:[%s0 + $0x8] sm:$0xff]
  %v16 = vld [vmem:[%s0 + $0x10] sm:$0xff]
  %v17 = vld [vmem:[%s0 + $0x18] sm:$0xff]
  %v18 = vld [vmem:[%s0 + $0x20] sm:$0xff]
  %v19 = vld [vmem:[%s0 + $0x28] sm:$0xff]
  %v20 = vld [vmem:[%s0 + $0x30] sm:$0xff]
  %v21 = vld [vmem:[%s0 + $0x38] sm:$0xff]
  %v22 = vld [vmem:[%s1] sm:$0xff]
  %v23 = vld [vmem:[%s1 + $0x8] sm:$0xff]
  %v24 = vld [vmem:[%s1 + $0x10] sm:$0xff]
  %v25 = vld [vmem:[%s1 + $0x18] sm:$0xff]
  %v26 = vld [vmem:[%s1 + $0x20] sm:$0xff]
  %v27 = vld [vmem:[%s1 + $0x28] sm:$0xff]
  %v28 = vld [vmem:[%s1 + $0x30] sm:$0xff]
  %v29 = vld [vmem:[%s1 + $0x38] sm:$0xff]
  %v30 = vld [vmem:[%s1 + $0x40] sm:$0xff]
  %v31 = vld [vmem:[%s1 + $0x48] sm:$0xff]
  %v32 = vld [vmem:[%s1 + $0x50] sm:$0xff]
  %v33 = vld [vmem:[%s1 + $0x58] sm:$0xff]
  %v34 = vld [vmem:[%s1 + $0x60] sm:$0xff]
  %v35 = vld [vmem:[%s1 + $0x68] sm:$0xff]
  %v36 = vld [vmem:[%s1 + $0x70] sm:$0xff]
  %v37 = vld [vmem:[%s1 + $0x78] sm:$0xff]
  %v38 = vld [vmem:[%s1 + $0x80] sm:$0xff]
  %v39 = vld [vmem:[%s1 + $0x88] sm:$0xff]
  %v40 = vld [vmem:[%s1 + $0x90] sm:$0xff]
  %v41 = vld [vmem:[%s1 + $0x98] sm:$0xff]
  %v42 = vld [vmem:[%s1 + $0xa0] sm:$0xff]
  %v43 = vld [vmem:[%s1 + $0xa8] sm:$0xff]
  %v44 = vld [vmem:[%s1 + $0xb0] sm:$0xff]
  %v45 = vld [vmem:[%s1 + $0xb8] sm:$0xff]
  %v46 = vld [vmem:[%s1 + $0xc0] sm:$0xff]
  %v47 = vld [vmem:[%s1 + $0xc8] sm:$0xff]
  %v48 = vld [vmem:[%s1 + $0xd0] sm:$0xff]
  %v49 = vld [vmem:[%s1 + $0xd8] sm:$0xff]
  %v50 = vld [vmem:[%s1 + $0xe0] sm:$0xff]
  %v51 = vld [vmem:[%s1 + $0xe8] sm:$0xff]
  %v52 = vld [vmem:[%s1 + $0xf0] sm:$0xff]
  %v53 = vld [vmem:[%s1 + $0xf8] sm:$0xff]
  %v54 = vld [vmem:[%s1 + $0x100] sm:$0xff]
  %v55 = vld [vmem:[%s1 + $0x108] sm:$0xff]
  %v56 = vld [vmem:[%s1 + $0x110] sm:$0xff]
  %v57 = vld [vmem:[%s1 + $0x118] sm:$0xff]
  %v58 = vld [vmem:[%s1 + $0x120] sm:$0xff]
  %v59 = vld [vmem:[%s1 + $0x128] sm:$0xff]
  %v60 = vld [vmem:[%s1 + $0x130] sm:$0xff]
  %v61 = vld [vmem:[%s1 + $0x138] sm:$0xff]
  %v62 = vld [vmem:[%s1 + $0x140] sm:$0xff]
  %v63 = vld [vmem:[%s1 + $0x148] sm:$0xff]
  %v64 = vld [vmem:[%s1 + $0x150] sm:$0xff]
  %v65 = vld [vmem:[%s1 + $0x158] sm:$0xff]
  %v66 = vld [vmem:[%s1 + $0x160] sm:$0xff]
  %v67 = vld [vmem:[%s1 + $0x168] sm:$0xff]
  %v68 = vld [vmem:[%s1 + $0x170] sm:$0xff]
  %v69 = vld [vmem:[%s1 + $0x178] sm:$0xff]
  %v70 = vld [vmem:[%s1 + $0x180] sm:$0xff]
  %v71 = vld [vmem:[%s1 + $0x188] sm:$0xff]
  %v72 = vld [vmem:[%s1 + $0x190] sm:$0xff]
  %v73 = vld [vmem:[%s1 + $0x198] sm:$0xff]
  %v74 = vld [vmem:[%s1 + $0x1a0] sm:$0xff]
  %v75 = vld [vmem:[%s1 + $0x1a8] sm:$0xff]
  %v76 = vld [vmem:[%s1 + $0x1b0] sm:$0xff]
  %v77 = vld [vmem:[%s1 + $0x1b8] sm:$0xff]
  %v78 = vld [vmem:[%s1 + $0x1c0] sm:$0xff]
  %v79 = vld [vmem:[%s1 + $0x1c8] sm:$0xff]
  %v80 = vld [vmem:[%s1 + $0x1d0] sm:$0xff]
  %v81 = vld [vmem:[%s1 + $0x1d8] sm:$0xff]
  %v82 = vld [vmem:[%s1 + $0x1e0] sm:$0xff]
  %v83 = vld [vmem:[%s1 + $0x1e8] sm:$0xff]
  %v84 = vld [vmem:[%s1 + $0x1f0] sm:$0xff]
  %v85 = vld [vmem:[%s1 + $0x1f8] sm:$0xff]
  %v86 = vld [vmem:[%s2] sm:$0xf]
  %v88 = vperm.slane %v86, 0
  %v89 = vperm.slane %v86, 1
  %v90 = vperm.slane %v86, 2
  %v91 = vperm.slane %v86, 3
  %96 = vmatpush.msra.mxu0 %v82
  %97 = vmatpush.msra.mxu0 %v78
  %98 = vmatpush.msra.mxu0 %v74
  %99 = vmatpush.msra.mxu0 %v70
  %100 = vmatpush.msra.mxu0 %v66
  %101 = vmatpush.msra.mxu0 %v62
  %102 = vmatpush.msra.mxu0 %v58
  %103 = vmatpush.msra.mxu0 %v54
  %104 = vmatpush.msra.mxu0 %v50
  %105 = vmatpush.msra.mxu0 %v46
  %106 = vmatpush.msra.mxu0 %v42
  %107 = vmatpush.msra.mxu0 %v38
  %108 = vmatpush.msra.mxu0 %v34
  %109 = vmatpush.msra.mxu0 %v30
  %110 = vmatpush.msra.mxu0 %v26
  %111 = vmatpush.msra.mxu0 %v22
  %112 = vmatmul.f32.gmra.mxu0 %v14
  %v113 = vpop.f32.mrf.mxu0
  %v114 = vadd.f32 %v88, %v113
  %115 = vmatmul.f32.gmra.mxu0 %v15
  %v116 = vpop.f32.mrf.mxu0
  %v117 = vadd.f32 %v88, %v116
  %118 = vmatmul.f32.gmra.mxu0 %v16
  %v119 = vpop.f32.mrf.mxu0
  %v120 = vadd.f32 %v88, %v119
  %121 = vmatmul.f32.gmra.mxu0 %v17
  %v122 = vpop.f32.mrf.mxu0
  %v123 = vadd.f32 %v88, %v122
  %124 = vmatmul.f32.gmra.mxu0 %v18
  %v125 = vpop.f32.mrf.mxu0
  %v126 = vadd.f32 %v88, %v125
  %127 = vmatmul.f32.gmra.mxu0 %v19
  %v128 = vpop.f32.mrf.mxu0
  %v129 = vadd.f32 %v88, %v128
  %130 = vmatmul.f32.gmra.mxu0 %v20
  %v131 = vpop.f32.mrf.mxu0
  %v132 = vadd.f32 %v88, %v131
  %133 = vmatmul.f32.gmra.mxu0 %v21
  %v134 = vpop.f32.mrf.mxu0
  %v135 = vadd.f32 %v88, %v134
  %136 = vdwg.mxu0
  %137 = vmatpush.msra.mxu0 %v83
  %138 = vmatpush.msra.mxu0 %v79
  %139 = vmatpush.msra.mxu0 %v75
  %140 = vmatpush.msra.mxu0 %v71
  %141 = vmatpush.msra.mxu0 %v67
  %142 = vmatpush.msra.mxu0 %v63
  %143 = vmatpush.msra.mxu0 %v59
  %144 = vmatpush.msra.mxu0 %v55
  %145 = vmatpush.msra.mxu0 %v51
  %146 = vmatpush.msra.mxu0 %v47
  %147 = vmatpush.msra.mxu0 %v43
  %148 = vmatpush.msra.mxu0 %v39
  %149 = vmatpush.msra.mxu0 %v35
  %150 = vmatpush.msra.mxu0 %v31
  %151 = vmatpush.msra.mxu0 %v27
  %152 = vmatpush.msra.mxu0 %v23
  %153 = vmatmul.f32.gmra.mxu0 %v14
  %v154 = vpop.f32.mrf.mxu0
  %v155 = vadd.f32 %v89, %v154
  %156 = vmatmul.f32.gmra.mxu0 %v15
  %v157 = vpop.f32.mrf.mxu0
  %v158 = vadd.f32 %v89, %v157
  %159 = vmatmul.f32.gmra.mxu0 %v16
  %v160 = vpop.f32.mrf.mxu0
  %v161 = vadd.f32 %v89, %v160
  %162 = vmatmul.f32.gmra.mxu0 %v17
  %v163 = vpop.f32.mrf.mxu0
  %v164 = vadd.f32 %v89, %v163
  %165 = vmatmul.f32.gmra.mxu0 %v18
  %v166 = vpop.f32.mrf.mxu0
  %v167 = vadd.f32 %v89, %v166
  %168 = vmatmul.f32.gmra.mxu0 %v19
  %v169 = vpop.f32.mrf.mxu0
  %v170 = vadd.f32 %v89, %v169
  %171 = vmatmul.f32.gmra.mxu0 %v20
  %v172 = vpop.f32.mrf.mxu0
  %v173 = vadd.f32 %v89, %v172
  %174 = vmatmul.f32.gmra.mxu0 %v21
  %v175 = vpop.f32.mrf.mxu0
  %v176 = vadd.f32 %v89, %v175
  %177 = vdwg.mxu0
  %178 = vmatpush.msra.mxu0 %v84
  %179 = vmatpush.msra.mxu0 %v80
  %180 = vmatpush.msra.mxu0 %v76
  %181 = vmatpush.msra.mxu0 %v72
  %182 = vmatpush.msra.mxu0 %v68
  %183 = vmatpush.msra.mxu0 %v64
  %184 = vmatpush.msra.mxu0 %v60
  %185 = vmatpush.msra.mxu0 %v56
  %186 = vmatpush.msra.mxu0 %v52
  %187 = vmatpush.msra.mxu0 %v48
  %188 = vmatpush.msra.mxu0 %v44
  %189 = vmatpush.msra.mxu0 %v40
  %190 = vmatpush.msra.mxu0 %v36
  %191 = vmatpush.msra.mxu0 %v32
  %192 = vmatpush.msra.mxu0 %v28
  %193 = vmatpush.msra.mxu0 %v24
  %194 = vmatmul.f32.gmra.mxu0 %v14
  %v195 = vpop.f32.mrf.mxu0
  %v196 = vadd.f32 %v90, %v195
  %197 = vmatmul.f32.gmra.mxu0 %v15
  %v198 = vpop.f32.mrf.mxu0
  %v199 = vadd.f32 %v90, %v198
  %200 = vmatmul.f32.gmra.mxu0 %v16
  %v201 = vpop.f32.mrf.mxu0
  %v202 = vadd.f32 %v90, %v201
  %203 = vmatmul.f32.gmra.mxu0 %v17
  %v204 = vpop.f32.mrf.mxu0
  %v205 = vadd.f32 %v90, %v204
  %206 = vmatmul.f32.gmra.mxu0 %v18
  %v207 = vpop.f32.mrf.mxu0
  %v208 = vadd.f32 %v90, %v207
  %209 = vmatmul.f32.gmra.mxu0 %v19
  %v210 = vpop.f32.mrf.mxu0
  %v211 = vadd.f32 %v90, %v210
  %212 = vmatmul.f32.gmra.mxu0 %v20
  %v213 = vpop.f32.mrf.mxu0
  %v214 = vadd.f32 %v90, %v213
  %215 = vmatmul.f32.gmra.mxu0 %v21
  %v216 = vpop.f32.mrf.mxu0
  %v217 = vadd.f32 %v90, %v216
  %218 = vdwg.mxu0
  %219 = vmatpush.msra.mxu0 %v85
  %220 = vmatpush.msra.mxu0 %v81
  %221 = vmatpush.msra.mxu0 %v77
  %222 = vmatpush.msra.mxu0 %v73
  %223 = vmatpush.msra.mxu0 %v69
  %224 = vmatpush.msra.mxu0 %v65
  %225 = vmatpush.msra.mxu0 %v61
  %226 = vmatpush.msra.mxu0 %v57
  %227 = vmatpush.msra.mxu0 %v53
  %228 = vmatpush.msra.mxu0 %v49
  %229 = vmatpush.msra.mxu0 %v45
  %230 = vmatpush.msra.mxu0 %v41
  %231 = vmatpush.msra.mxu0 %v37
  %232 = vmatpush.msra.mxu0 %v33
  %233 = vmatpush.msra.mxu0 %v29
  %234 = vmatpush.msra.mxu0 %v25
  %235 = vmatmul.f32.gmra.mxu0 %v14
  %v236 = vpop.f32.mrf.mxu0
  %v237 = vadd.f32 %v91, %v236
  %238 = vmatmul.f32.gmra.mxu0 %v15
  %v239 = vpop.f32.mrf.mxu0
  %v240 = vadd.f32 %v91, %v239
  %241 = vmatmul.f32.gmra.mxu0 %v16
  %v242 = vpop.f32.mrf.mxu0
  %v243 = vadd.f32 %v91, %v242
  %244 = vmatmul.f32.gmra.mxu0 %v17
  %v245 = vpop.f32.mrf.mxu0
  %v246 = vadd.f32 %v91, %v245
  %247 = vmatmul.f32.gmra.mxu0 %v18
  %v248 = vpop.f32.mrf.mxu0
  %v249 = vadd.f32 %v91, %v248
  %250 = vmatmul.f32.gmra.mxu0 %v19
  %v251 = vpop.f32.mrf.mxu0
  %v252 = vadd.f32 %v91, %v251
  %253 = vmatmul.f32.gmra.mxu0 %v20
  %v254 = vpop.f32.mrf.mxu0
  %v255 = vadd.f32 %v91, %v254
  %256 = vmatmul.f32.gmra.mxu0 %v21
  %v257 = vpop.f32.mrf.mxu0
  %v258 = vadd.f32 %v91, %v257
  %259 = vdwg.mxu0
  %260 = vst [vmem:[%s3] sm:$0xff] %v114
  %261 = vst [vmem:[%s3 + $0x8] sm:$0xff] %v155
  %262 = vst [vmem:[%s3 + $0x10] sm:$0xff] %v196
  %263 = vst [vmem:[%s3 + $0x18] sm:$0xff] %v237
  %264 = vst [vmem:[%s3 + $0x20] sm:$0xff] %v117
  %265 = vst [vmem:[%s3 + $0x28] sm:$0xff] %v158
  %266 = vst [vmem:[%s3 + $0x30] sm:$0xff] %v199
  %267 = vst [vmem:[%s3 + $0x38] sm:$0xff] %v240
  %268 = vst [vmem:[%s3 + $0x40] sm:$0xff] %v120
  %269 = vst [vmem:[%s3 + $0x48] sm:$0xff] %v161
  %270 = vst [vmem:[%s3 + $0x50] sm:$0xff] %v202
  %271 = vst [vmem:[%s3 + $0x58] sm:$0xff] %v243
  %272 = vst [vmem:[%s3 + $0x60] sm:$0xff] %v123
  %273 = vst [vmem:[%s3 + $0x68] sm:$0xff] %v164
  %274 = vst [vmem:[%s3 + $0x70] sm:$0xff] %v205
  %275 = vst [vmem:[%s3 + $0x78] sm:$0xff] %v246
  %276 = vst [vmem:[%s3 + $0x80] sm:$0xff] %v126
  %277 = vst [vmem:[%s3 + $0x88] sm:$0xff] %v167
  %278 = vst [vmem:[%s3 + $0x90] sm:$0xff] %v208
  %279 = vst [vmem:[%s3 + $0x98] sm:$0xff] %v249
  %280 = vst [vmem:[%s3 + $0xa0] sm:$0xff] %v129
  %281 = vst [vmem:[%s3 + $0xa8] sm:$0xff] %v170
  %282 = vst [vmem:[%s3 + $0xb0] sm:$0xff] %v211
  %283 = vst [vmem:[%s3 + $0xb8] sm:$0xff] %v252
  %284 = vst [vmem:[%s3 + $0xc0] sm:$0xff] %v132
  %285 = vst [vmem:[%s3 + $0xc8] sm:$0xff] %v173
  %286 = vst [vmem:[%s3 + $0xd0] sm:$0xff] %v214
  %287 = vst [vmem:[%s3 + $0xd8] sm:$0xff] %v255
  %288 = vst [vmem:[%s3 + $0xe0] sm:$0xff] %v135
  %289 = vst [vmem:[%s3 + $0xe8] sm:$0xff] %v176
  %290 = vst [vmem:[%s3 + $0xf0] sm:$0xff] %v217
  %291 = vst [vmem:[%s3 + $0xf8] sm:$0xff] %v258
  // Predicated region
  $region14: #{rnn_forward.7} parent=0 // pred_check
    _
  $region15: #{rnn_forward.7} parent=0 // pred_check_branch
    %293 = sbr.rel (0) target = $region17
  $region16: #{rnn_forward.7} parent=0 // pred_region
    _
  $region17: #{rnn_forward.7} parent=0 // pred_fallthru
    _
  // Predicated region
  $region18: #{rnn_forward.7} parent=0 // pred_check
    _
  $region19: #{rnn_forward.7} parent=0 // pred_check_branch
    %295 = sbr.rel (0) target = $region21
  $region20: #{rnn_forward.7} parent=0 // pred_region
    _
  $region21: #{rnn_forward.7} parent=0 // pred_fallthru
    _

// kernel: rnn_forward.9
$region0: #{rnn_forward.9}
  #allocation0 [shape = 'u32[]', space=smem, size = 0x4, offset = 0x4, fixed_abs, tag = 'smem constant byte address 0x4 - core index']
  #allocation1 [shape = 'u32[72,128]{1,0:T(1,128)}', space=vmem, size = 0x9000, scoped, tag = 'internal scratch']
  #allocation2 [shape = 'f32[8,8,128]{2,1,0:T(8,128)}', space=vmem, size = 0x8000, scoped, tag = 'scratch operand']
  %s0 = inlined_call_operand.vmem [shape: f32[8,8,512], index: 0, kind: input, shape index: {}]
  %s1 = inlined_call_operand.vmem [shape: f32[8,8,512], index: 1, kind: input, shape index: {}]
  %s2 = inlined_call_operand.vmem [shape: f32[8,8,1], index: 2, kind: input, shape index: {}]
  %s3 = inlined_call_operand.vmem [shape: f32[128,512], index: 3, kind: input, shape index: {}]
  %s4 = inlined_call_operand.vmem [shape: f32[128,512], index: 4, kind: input, shape index: {}]
  %s5 = inlined_call_operand.vmem [shape: f32[8,8,128], index: 5, kind: output, shape index: {0}]
  %s6 = inlined_call_operand.vmem [shape: f32[2,8,128], index: 6, kind: output, shape index: {1}]
  %s7 = inlined_call_operand.vmem [shape: f32[2,8,128], index: 7, kind: output, shape index: {2}]
  %8 = xla_tuple %s5, %s6, %s7
  %s9 = sld [smem:[#allocation0]]
  $region53: #{rnn_forward.9} parent=0
    _
  %s11 = ssub.s32 1, %s9
  %s12 = scalar_select 0, %s11, %s9
  // Predicated region
  $region2: #{rnn_forward.9} parent=0 // pred_check
    _
  $region3: #{rnn_forward.9} parent=0 // pred_check_branch
    %14 = sbr.rel (0) target = $region5
  $region4: #{rnn_forward.9} parent=0 // pred_region
    _
  $region5: #{rnn_forward.9} parent=0 // pred_fallthru
    _
  // Predicated region
  $region6: #{rnn_forward.9} parent=0 // pred_check
    _
  $region7: #{rnn_forward.9} parent=0 // pred_check_branch
    %16 = sbr.rel (0) target = $region9
  $region8: #{rnn_forward.9} parent=0 // pred_region
    _
  $region9: #{rnn_forward.9} parent=0 // pred_fallthru
    _
  // Predicated region
  $region10: #{rnn_forward.9} parent=0 // pred_check
    _
  $region11: #{rnn_forward.9} parent=0 // pred_check_branch
    %18 = sbr.rel (0) target = $region13
  $region12: #{rnn_forward.9} parent=0 // pred_region
    _
  $region13: #{rnn_forward.9} parent=0 // pred_fallthru
    _
  // Predicated region
  $region14: #{rnn_forward.9} parent=0 // pred_check
    _
  $region15: #{rnn_forward.9} parent=0 // pred_check_branch
    %20 = sbr.rel (0) target = $region17
  $region16: #{rnn_forward.9} parent=0 // pred_region
    _
  $region17: #{rnn_forward.9} parent=0 // pred_fallthru
    _
  // Predicated region
  $region18: #{rnn_forward.9} parent=0 // pred_check
    _
  $region19: #{rnn_forward.9} parent=0 // pred_check_branch
    %22 = sbr.rel (0) target = $region21
  $region20: #{rnn_forward.9} parent=0 // pred_region
    _
  $region21: #{rnn_forward.9} parent=0 // pred_fallthru
    _
  %v23 = vld [vmem:[%s3] sm:$0xff]
  %v24 = vld [vmem:[%s3 + $0x8] sm:$0xff]
  %v25 = vld [vmem:[%s3 + $0x10] sm:$0xff]
  %v26 = vld [vmem:[%s3 + $0x18] sm:$0xff]
  %v27 = vld [vmem:[%s3 + $0x20] sm:$0xff]
  %v28 = vld [vmem:[%s3 + $0x28] sm:$0xff]
  %v29 = vld [vmem:[%s3 + $0x30] sm:$0xff]
  %v30 = vld [vmem:[%s3 + $0x38] sm:$0xff]
  %v31 = vld [vmem:[%s3 + $0x40] sm:$0xff]
  %v32 = vld [vmem:[%s3 + $0x48] sm:$0xff]
  %v33 = vld [vmem:[%s3 + $0x50] sm:$0xff]
  %v34 = vld [vmem:[%s3 + $0x58] sm:$0xff]
  %v35 = vld [vmem:[%s3 + $0x60] sm:$0xff]
  %v36 = vld [vmem:[%s3 + $0x68] sm:$0xff]
  %v37 = vld [vmem:[%s3 + $0x70] sm:$0xff]
  %v38 = vld [vmem:[%s3 + $0x78] sm:$0xff]
  %v39 = vld [vmem:[%s3 + $0x80] sm:$0xff]
  %v40 = vld [vmem:[%s3 + $0x88] sm:$0xff]
  %v41 = vld [vmem:[%s3 + $0x90] sm:$0xff]
  %v42 = vld [vmem:[%s3 + $0x98] sm:$0xff]
  %v43 = vld [vmem:[%s3 + $0xa0] sm:$0xff]
  %v44 = vld [vmem:[%s3 + $0xa8] sm:$0xff]
  %v45 = vld [vmem:[%s3 + $0xb0] sm:$0xff]
  %v46 = vld [vmem:[%s3 + $0xb8] sm:$0xff]
  %v47 = vld [vmem:[%s3 + $0xc0] sm:$0xff]
  %v48 = vld [vmem:[%s3 + $0xc8] sm:$0xff]
  %v49 = vld [vmem:[%s3 + $0xd0] sm:$0xff]
  %v50 = vld [vmem:[%s3 + $0xd8] sm:$0xff]
  %v51 = vld [vmem:[%s3 + $0xe0] sm:$0xff]
  %v52 = vld [vmem:[%s3 + $0xe8] sm:$0xff]
  %v53 = vld [vmem:[%s3 + $0xf0] sm:$0xff]
  %v54 = vld [vmem:[%s3 + $0xf8] sm:$0xff]
  %v55 = vld [vmem:[%s3 + $0x100] sm:$0xff]
  %v56 = vld [vmem:[%s3 + $0x108] sm:$0xff]
  %v57 = vld [vmem:[%s3 + $0x110] sm:$0xff]
  %v58 = vld [vmem:[%s3 + $0x118] sm:$0xff]
  %v59 = vld [vmem:[%s3 + $0x120] sm:$0xff]
  %v60 = vld [vmem:[%s3 + $0x128] sm:$0xff]
  %v61 = vld [vmem:[%s3 + $0x130] sm:$0xff]
  %v62 = vld [vmem:[%s3 + $0x138] sm:$0xff]
  %v63 = vld [vmem:[%s3 + $0x140] sm:$0xff]
  %v64 = vld [vmem:[%s3 + $0x148] sm:$0xff]
  %v65 = vld [vmem:[%s3 + $0x150] sm:$0xff]
  %v66 = vld [vmem:[%s3 + $0x158] sm:$0xff]
  %v67 = vld [vmem:[%s3 + $0x160] sm:$0xff]
  %v68 = vld [vmem:[%s3 + $0x168] sm:$0xff]
  %v69 = vld [vmem:[%s3 + $0x170] sm:$0xff]
  %v70 = vld [vmem:[%s3 + $0x178] sm:$0xff]
  %v71 = vld [vmem:[%s3 + $0x180] sm:$0xff]
  %v72 = vld [vmem:[%s3 + $0x188] sm:$0xff]
  %v73 = vld [vmem:[%s3 + $0x190] sm:$0xff]
  %v74 = vld [vmem:[%s3 + $0x198] sm:$0xff]
  %v75 = vld [vmem:[%s3 + $0x1a0] sm:$0xff]
  %v76 = vld [vmem:[%s3 + $0x1a8] sm:$0xff]
  %v77 = vld [vmem:[%s3 + $0x1b0] sm:$0xff]
  %v78 = vld [vmem:[%s3 + $0x1b8] sm:$0xff]
  %v79 = vld [vmem:[%s3 + $0x1c0] sm:$0xff]
  %v80 = vld [vmem:[%s3 + $0x1c8] sm:$0xff]
  %v81 = vld [vmem:[%s3 + $0x1d0] sm:$0xff]
  %v82 = vld [vmem:[%s3 + $0x1d8] sm:$0xff]
  %v83 = vld [vmem:[%s3 + $0x1e0] sm:$0xff]
  %v84 = vld [vmem:[%s3 + $0x1e8] sm:$0xff]
  %v85 = vld [vmem:[%s3 + $0x1f0] sm:$0xff]
  %v86 = vld [vmem:[%s3 + $0x1f8] sm:$0xff]
  %v87 = vld [vmem:[%s4] sm:$0xff]
  %v88 = vld [vmem:[%s4 + $0x8] sm:$0xff]
  %v89 = vld [vmem:[%s4 + $0x10] sm:$0xff]
  %v90 = vld [vmem:[%s4 + $0x18] sm:$0xff]
  %v91 = vld [vmem:[%s4 + $0x20] sm:$0xff]
  %v92 = vld [vmem:[%s4 + $0x28] sm:$0xff]
  %v93 = vld [vmem:[%s4 + $0x30] sm:$0xff]
  %v94 = vld [vmem:[%s4 + $0x38] sm:$0xff]
  %v95 = vld [vmem:[%s4 + $0x40] sm:$0xff]
  %v96 = vld [vmem:[%s4 + $0x48] sm:$0xff]
  %v97 = vld [vmem:[%s4 + $0x50] sm:$0xff]
  %v98 = vld [vmem:[%s4 + $0x58] sm:$0xff]
  %v99 = vld [vmem:[%s4 + $0x60] sm:$0xff]
  %v100 = vld [vmem:[%s4 + $0x68] sm:$0xff]
  %v101 = vld [vmem:[%s4 + $0x70] sm:$0xff]
  %v102 = vld [vmem:[%s4 + $0x78] sm:$0xff]
  %v103 = vld [vmem:[%s4 + $0x80] sm:$0xff]
  %v104 = vld [vmem:[%s4 + $0x88] sm:$0xff]
  %v105 = vld [vmem:[%s4 + $0x90] sm:$0xff]
  %v106 = vld [vmem:[%s4 + $0x98] sm:$0xff]
  %v107 = vld [vmem:[%s4 + $0xa0] sm:$0xff]
  %v108 = vld [vmem:[%s4 + $0xa8] sm:$0xff]
  %v109 = vld [vmem:[%s4 + $0xb0] sm:$0xff]
  %v110 = vld [vmem:[%s4 + $0xb8] sm:$0xff]
  %v111 = vld [vmem:[%s4 + $0xc0] sm:$0xff]
  %v112 = vld [vmem:[%s4 + $0xc8] sm:$0xff]
  %v113 = vld [vmem:[%s4 + $0xd0] sm:$0xff]
  %v114 = vld [vmem:[%s4 + $0xd8] sm:$0xff]
  %v115 = vld [vmem:[%s4 + $0xe0] sm:$0xff]
  %v116 = vld [vmem:[%s4 + $0xe8] sm:$0xff]
  %v117 = vld [vmem:[%s4 + $0xf0] sm:$0xff]
  %v118 = vld [vmem:[%s4 + $0xf8] sm:$0xff]
  %v119 = vld [vmem:[%s4 + $0x100] sm:$0xff]
  %v120 = vld [vmem:[%s4 + $0x108] sm:$0xff]
  %v121 = vld [vmem:[%s4 + $0x110] sm:$0xff]
  %v122 = vld [vmem:[%s4 + $0x118] sm:$0xff]
  %v123 = vld [vmem:[%s4 + $0x120] sm:$0xff]
  %v124 = vld [vmem:[%s4 + $0x128] sm:$0xff]
  %v125 = vld [vmem:[%s4 + $0x130] sm:$0xff]
  %v126 = vld [vmem:[%s4 + $0x138] sm:$0xff]
  %v127 = vld [vmem:[%s4 + $0x140] sm:$0xff]
  %v128 = vld [vmem:[%s4 + $0x148] sm:$0xff]
  %v129 = vld [vmem:[%s4 + $0x150] sm:$0xff]
  %v130 = vld [vmem:[%s4 + $0x158] sm:$0xff]
  %v131 = vld [vmem:[%s4 + $0x160] sm:$0xff]
  %v132 = vld [vmem:[%s4 + $0x168] sm:$0xff]
  %v133 = vld [vmem:[%s4 + $0x170] sm:$0xff]
  %v134 = vld [vmem:[%s4 + $0x178] sm:$0xff]
  %v135 = vld [vmem:[%s4 + $0x180] sm:$0xff]
  %v136 = vld [vmem:[%s4 + $0x188] sm:$0xff]
  %v137 = vld [vmem:[%s4 + $0x190] sm:$0xff]
  %v138 = vld [vmem:[%s4 + $0x198] sm:$0xff]
  %v139 = vld [vmem:[%s4 + $0x1a0] sm:$0xff]
  %v140 = vld [vmem:[%s4 + $0x1a8] sm:$0xff]
  %v141 = vld [vmem:[%s4 + $0x1b0] sm:$0xff]
  %v142 = vld [vmem:[%s4 + $0x1b8] sm:$0xff]
  %v143 = vld [vmem:[%s4 + $0x1c0] sm:$0xff]
  %v144 = vld [vmem:[%s4 + $0x1c8] sm:$0xff]
  %v145 = vld [vmem:[%s4 + $0x1d0] sm:$0xff]
  %v146 = vld [vmem:[%s4 + $0x1d8] sm:$0xff]
  %v147 = vld [vmem:[%s4 + $0x1e0] sm:$0xff]
  %v148 = vld [vmem:[%s4 + $0x1e8] sm:$0xff]
  %v149 = vld [vmem:[%s4 + $0x1f0] sm:$0xff]
  %v150 = vld [vmem:[%s4 + $0x1f8] sm:$0xff]
  loop: start=0, step=1, limit=8
  $region22: #{rnn_forward.9} parent=0 // loop_pre_header
    _
  $region23: #{rnn_forward.9} parent=0 // loop_header
    %s152 = sphi 0, %s156
    %p153 = scmp.ge.s32.totalorder %s152, 8
    %v157 = vphi 0.0, %v489
    %v158 = vphi 0.0, %v492
    %v159 = vphi 0.0, %v506
    %v160 = vphi 0.0, %v509
  $region24: #{rnn_forward.9} parent=0 // loop_header_branch
    %155 = sbr.rel (%p153) target = $region28
  $region25: #{rnn_forward.9} parent=0 // loop_body
    %s161 = ssub.s32 7, %s152
    %s162 = smul.u32 %s152, 4
    %s163 = smul.addr %s162, 8
    %s164 = scalar_lea.vmem %s0, %s163
    %v165 = vld [vmem:[%s164] sm:$0xff]
    %v166 = vld [vmem:[%s164 + $0x8] sm:$0xff]
    %v167 = vld [vmem:[%s164 + $0x10] sm:$0xff]
    %v168 = vld [vmem:[%s164 + $0x18] sm:$0xff]
    %169 = vmatpush.msra.mxu0 %v83
    %170 = vmatpush.msra.mxu0 %v79
    %171 = vmatpush.msra.mxu0 %v75
    %172 = vmatpush.msra.mxu0 %v71
    %173 = vmatpush.msra.mxu0 %v67
    %174 = vmatpush.msra.mxu0 %v63
    %175 = vmatpush.msra.mxu0 %v59
    %176 = vmatpush.msra.mxu0 %v55
    %177 = vmatpush.msra.mxu0 %v51
    %178 = vmatpush.msra.mxu0 %v47
    %179 = vmatpush.msra.mxu0 %v43
    %180 = vmatpush.msra.mxu0 %v39
    %181 = vmatpush.msra.mxu0 %v35
    %182 = vmatpush.msra.mxu0 %v31
    %183 = vmatpush.msra.mxu0 %v27
    %184 = vmatpush.msra.mxu0 %v23
    %185 = vmatmul.f32.gmra.mxu0 %v157
    %v186 = vpop.f32.mrf.mxu0
    %v187 = vadd.f32 0.0, %v186
    %188 = vdwg.mxu0
    %189 = vmatpush.msra.mxu0 %v84
    %190 = vmatpush.msra.mxu0 %v80
    %191 = vmatpush.msra.mxu0 %v76
    %192 = vmatpush.msra.mxu0 %v72
    %193 = vmatpush.msra.mxu0 %v68
    %194 = vmatpush.msra.mxu0 %v64
    %195 = vmatpush.msra.mxu0 %v60
    %196 = vmatpush.msra.mxu0 %v56
    %197 = vmatpush.msra.mxu0 %v52
    %198 = vmatpush.msra.mxu0 %v48
    %199 = vmatpush.msra.mxu0 %v44
    %200 = vmatpush.msra.mxu0 %v40
    %201 = vmatpush.msra.mxu0 %v36
    %202 = vmatpush.msra.mxu0 %v32
    %203 = vmatpush.msra.mxu0 %v28
    %204 = vmatpush.msra.mxu0 %v24
    %205 = vmatmul.f32.gmra.mxu0 %v157
    %v206 = vpop.f32.mrf.mxu0
    %v207 = vadd.f32 0.0, %v206
    %208 = vdwg.mxu0
    %209 = vmatpush.msra.mxu0 %v85
    %210 = vmatpush.msra.mxu0 %v81
    %211 = vmatpush.msra.mxu0 %v77
    %212 = vmatpush.msra.mxu0 %v73
    %213 = vmatpush.msra.mxu0 %v69
    %214 = vmatpush.msra.mxu0 %v65
    %215 = vmatpush.msra.mxu0 %v61
    %216 = vmatpush.msra.mxu0 %v57
    %217 = vmatpush.msra.mxu0 %v53
    %218 = vmatpush.msra.mxu0 %v49
    %219 = vmatpush.msra.mxu0 %v45
    %220 = vmatpush.msra.mxu0 %v41
    %221 = vmatpush.msra.mxu0 %v37
    %222 = vmatpush.msra.mxu0 %v33
    %223 = vmatpush.msra.mxu0 %v29
    %224 = vmatpush.msra.mxu0 %v25
    %225 = vmatmul.f32.gmra.mxu0 %v157
    %v226 = vpop.f32.mrf.mxu0
    %v227 = vadd.f32 0.0, %v226
    %228 = vdwg.mxu0
    %229 = vmatpush.msra.mxu0 %v86
    %230 = vmatpush.msra.mxu0 %v82
    %231 = vmatpush.msra.mxu0 %v78
    %232 = vmatpush.msra.mxu0 %v74
    %233 = vmatpush.msra.mxu0 %v70
    %234 = vmatpush.msra.mxu0 %v66
    %235 = vmatpush.msra.mxu0 %v62
    %236 = vmatpush.msra.mxu0 %v58
    %237 = vmatpush.msra.mxu0 %v54
    %238 = vmatpush.msra.mxu0 %v50
    %239 = vmatpush.msra.mxu0 %v46
    %240 = vmatpush.msra.mxu0 %v42
    %241 = vmatpush.msra.mxu0 %v38
    %242 = vmatpush.msra.mxu0 %v34
    %243 = vmatpush.msra.mxu0 %v30
    %244 = vmatpush.msra.mxu0 %v26
    %245 = vmatmul.f32.gmra.mxu0 %v157
    %v246 = vpop.f32.mrf.mxu0
    %v247 = vadd.f32 0.0, %v246
    %248 = vdwg.mxu0
    %v249 = vadd.f32 %v165, %v187
    %v250 = vadd.f32 %v166, %v207
    %v251 = vadd.f32 %v167, %v227
    %v252 = vadd.f32 %v168, %v247
    %s253 = smul.u32 %s161, 4
    %s254 = smul.addr %s253, 8
    %s255 = scalar_lea.vmem %s1, %s254
    %v256 = vld [vmem:[%s255] sm:$0xff]
    %v257 = vld [vmem:[%s255 + $0x8] sm:$0xff]
    %v258 = vld [vmem:[%s255 + $0x10] sm:$0xff]
    %v259 = vld [vmem:[%s255 + $0x18] sm:$0xff]
    %260 = vmatpush.msra.mxu0 %v147
    %261 = vmatpush.msra.mxu0 %v143
    %262 = vmatpush.msra.mxu0 %v139
    %263 = vmatpush.msra.mxu0 %v135
    %264 = vmatpush.msra.mxu0 %v131
    %265 = vmatpush.msra.mxu0 %v127
    %266 = vmatpush.msra.mxu0 %v123
    %267 = vmatpush.msra.mxu0 %v119
    %268 = vmatpush.msra.mxu0 %v115
    %269 = vmatpush.msra.mxu0 %v111
    %270 = vmatpush.msra.mxu0 %v107
    %271 = vmatpush.msra.mxu0 %v103
    %272 = vmatpush.msra.mxu0 %v99
    %273 = vmatpush.msra.mxu0 %v95
    %274 = vmatpush.msra.mxu0 %v91
    %275 = vmatpush.msra.mxu0 %v87
    %276 = vmatmul.f32.gmra.mxu0 %v159
    %v277 = vpop.f32.mrf.mxu0
    %v278 = vadd.f32 0.0, %v277
    %279 = vdwg.mxu0
    %280 = vmatpush.msra.mxu0 %v148
    %281 = vmatpush.msra.mxu0 %v144
    %282 = vmatpush.msra.mxu0 %v140
    %283 = vmatpush.msra.mxu0 %v136
    %284 = vmatpush.msra.mxu0 %v132
    %285 = vmatpush.msra.mxu0 %v128
    %286 = vmatpush.msra.mxu0 %v124
    %287 = vmatpush.msra.mxu0 %v120
    %288 = vmatpush.msra.mxu0 %v116
    %289 = vmatpush.msra.mxu0 %v112
    %290 = vmatpush.msra.mxu0 %v108
    %291 = vmatpush.msra.mxu0 %v104
    %292 = vmatpush.msra.mxu0 %v100
    %293 = vmatpush.msra.mxu0 %v96
    %294 = vmatpush.msra.mxu0 %v92
    %295 = vmatpush.msra.mxu0 %v88
    %296 = vmatmul.f32.gmra.mxu0 %v159
    %v297 = vpop.f32.mrf.mxu0
    %v298 = vadd.f32 0.0, %v297
    %299 = vdwg.mxu0
    %300 = vmatpush.msra.mxu0 %v149
    %301 = vmatpush.msra.mxu0 %v145
    %302 = vmatpush.msra.mxu0 %v141
    %303 = vmatpush.msra.mxu0 %v137
    %304 = vmatpush.msra.mxu0 %v133
    %305 = vmatpush.msra.mxu0 %v129
    %306 = vmatpush.msra.mxu0 %v125
    %307 = vmatpush.msra.mxu0 %v121
    %308 = vmatpush.msra.mxu0 %v117
    %309 = vmatpush.msra.mxu0 %v113
    %310 = vmatpush.msra.mxu0 %v109
    %311 = vmatpush.msra.mxu0 %v105
    %312 = vmatpush.msra.mxu0 %v101
    %313 = vmatpush.msra.mxu0 %v97
    %314 = vmatpush.msra.mxu0 %v93
    %315 = vmatpush.msra.mxu0 %v89
    %316 = vmatmul.f32.gmra.mxu0 %v159
    %v317 = vpop.f32.mrf.mxu0
    %v318 = vadd.f32 0.0, %v317
    %319 = vdwg.mxu0
    %320 = vmatpush.msra.mxu0 %v150
    %321 = vmatpush.msra.mxu0 %v146
    %322 = vmatpush.msra.mxu0 %v142
    %323 = vmatpush.msra.mxu0 %v138
    %324 = vmatpush.msra.mxu0 %v134
    %325 = vmatpush.msra.mxu0 %v130
    %326 = vmatpush.msra.mxu0 %v126
    %327 = vmatpush.msra.mxu0 %v122
    %328 = vmatpush.msra.mxu0 %v118
    %329 = vmatpush.msra.mxu0 %v114
    %330 = vmatpush.msra.mxu0 %v110
    %331 = vmatpush.msra.mxu0 %v106
    %332 = vmatpush.msra.mxu0 %v102
    %333 = vmatpush.msra.mxu0 %v98
    %334 = vmatpush.msra.mxu0 %v94
    %335 = vmatpush.msra.mxu0 %v90
    %336 = vmatmul.f32.gmra.mxu0 %v159
    %v337 = vpop.f32.mrf.mxu0
    %v338 = vadd.f32 0.0, %v337
    %339 = vdwg.mxu0
    %v340 = vadd.f32 %v256, %v278
    %v341 = vadd.f32 %v257, %v298
    %v342 = vadd.f32 %v258, %v318
    %v343 = vadd.f32 %v259, %v338
    %v344 = vxor.u32 %v249, 2147483648
    %v345 = vmul.f32 %v344, 1.442695
    %v346 = vpow.pop %v345
    %v347 = vadd.f32 %v346, 1.0
    %v348 = vrcp.pop %v347
    %v349 = vmul.f32 %v347, %v348
    %v350 = vsub.f32 1.0, %v349
    %v351 = vmul.f32 %v348, %v350
    %v352 = vadd.f32 %v348, %v351
    %vm353 = vweird.f32 %v347
    %vm354 = vweird.f32 %v348
    %vm355 = vmor %vm353, %vm354
    %v356 = vsel %vm355, %v348, %v352
    %v357 = vand.u32 2147483647, %v347
    %vm358 = vcmp.eq.f32.partialorder %v357, 8.507059e+37
    %v359 = vand.u32 %v347, 2147483648
    %v360 = vor.u32 1.1754944e-38, %v359
    %v361 = vsel %vm358, %v360, %v356
    %v362 = vmul.f32 1.0, %v361
    %v363 = vxor.u32 %v250, 2147483648
    %v364 = vmul.f32 %v363, 1.442695
    %v365 = vpow.pop %v364
    %v366 = vadd.f32 %v365, 1.0
    %v367 = vrcp.pop %v366
    %v368 = vmul.f32 %v366, %v367
    %v369 = vsub.f32 1.0, %v368
    %v370 = vmul.f32 %v367, %v369
    %v371 = vadd.f32 %v367, %v370
    %vm372 = vweird.f32 %v366
    %vm373 = vweird.f32 %v367
    %vm374 = vmor %vm372, %vm373
    %v375 = vsel %vm374, %v367, %v371
    %v376 = vand.u32 2147483647, %v366
    %vm377 = vcmp.eq.f32.partialorder %v376, 8.507059e+37
    %v378 = vand.u32 %v366, 2147483648
    %v379 = vor.u32 1.1754944e-38, %v378
    %v380 = vsel %vm377, %v379, %v375
    %v381 = vmul.f32 1.0, %v380
    %v382 = vtanh.pop %v251
    %v383 = vxor.u32 %v252, 2147483648
    %v384 = vmul.f32 %v383, 1.442695
    %v385 = vpow.pop %v384
    %v386 = vadd.f32 %v385, 1.0
    %v387 = vrcp.pop %v386
    %v388 = vmul.f32 %v386, %v387
    %v389 = vsub.f32 1.0, %v388
    %v390 = vmul.f32 %v387, %v389
    %v391 = vadd.f32 %v387, %v390
    %vm392 = vweird.f32 %v386
    %vm393 = vweird.f32 %v387
    %vm394 = vmor %vm392, %vm393
    %v395 = vsel %vm394, %v387, %v391
    %v396 = vand.u32 2147483647, %v386
    %vm397 = vcmp.eq.f32.partialorder %v396, 8.507059e+37
    %v398 = vand.u32 %v386, 2147483648
    %v399 = vor.u32 1.1754944e-38, %v398
    %v400 = vsel %vm397, %v399, %v395
    %v401 = vmul.f32 1.0, %v400
    %v402 = vmul.f32 %v381, %v158
    %v403 = vmul.f32 %v362, %v382
    %v404 = vadd.f32 %v402, %v403
    %v405 = vtanh.pop %v404
    %v406 = vmul.f32 %v401, %v405
    %v407 = vxor.u32 %v340, 2147483648
    %v408 = vmul.f32 %v407, 1.442695
    %v409 = vpow.pop %v408
    %v410 = vadd.f32 %v409, 1.0
    %v411 = vrcp.pop %v410
    %v412 = vmul.f32 %v410, %v411
    %v413 = vsub.f32 1.0, %v412
    %v414 = vmul.f32 %v411, %v413
    %v415 = vadd.f32 %v411, %v414
    %vm416 = vweird.f32 %v410
    %vm417 = vweird.f32 %v411
    %vm418 = vmor %vm416, %vm417
    %v419 = vsel %vm418, %v411, %v415
    %v420 = vand.u32 2147483647, %v410
    %vm421 = vcmp.eq.f32.partialorder %v420, 8.507059e+37
    %v422 = vand.u32 %v410, 2147483648
    %v423 = vor.u32 1.1754944e-38, %v422
    %v424 = vsel %vm421, %v423, %v419
    %v425 = vmul.f32 1.0, %v424
    %v426 = vxor.u32 %v341, 2147483648
    %v427 = vmul.f32 %v426, 1.442695
    %v428 = vpow.pop %v427
    %v429 = vadd.f32 %v428, 1.0
    %v430 = vrcp.pop %v429
    %v431 = vmul.f32 %v429, %v430
    %v432 = vsub.f32 1.0, %v431
    %v433 = vmul.f32 %v430, %v432
    %v434 = vadd.f32 %v430, %v433
    %vm435 = vweird.f32 %v429
    %vm436 = vweird.f32 %v430
    %vm437 = vmor %vm435, %vm436
    %v438 = vsel %vm437, %v430, %v434
    %v439 = vand.u32 2147483647, %v429
    %vm440 = vcmp.eq.f32.partialorder %v439, 8.507059e+37
    %v441 = vand.u32 %v429, 2147483648
    %v442 = vor.u32 1.1754944e-38, %v441
    %v443 = vsel %vm440, %v442, %v438
    %v444 = vmul.f32 1.0, %v443
    %v445 = vtanh.pop %v342
    %v446 = vxor.u32 %v343, 2147483648
    %v447 = vmul.f32 %v446, 1.442695
    %v448 = vpow.pop %v447
    %v449 = vadd.f32 %v448, 1.0
    %v450 = vrcp.pop %v449
    %v451 = vmul.f32 %v449, %v450
    %v452 = vsub.f32 1.0, %v451
    %v453 = vmul.f32 %v450, %v452
    %v454 = vadd.f32 %v450, %v453
    %vm455 = vweird.f32 %v449
    %vm456 = vweird.f32 %v450
    %vm457 = vmor %vm455, %vm456
    %v458 = vsel %vm457, %v450, %v454
    %v459 = vand.u32 2147483647, %v449
    %vm460 = vcmp.eq.f32.partialorder %v459, 8.507059e+37
    %v461 = vand.u32 %v449, 2147483648
    %v462 = vor.u32 1.1754944e-38, %v461
    %v463 = vsel %vm460, %v462, %v458
    %v464 = vmul.f32 1.0, %v463
    %v465 = vmul.f32 %v444, %v160
    %v466 = vmul.f32 %v425, %v445
    %v467 = vadd.f32 %v465, %v466
    %v468 = vtanh.pop %v467
    %v469 = vmul.f32 %v464, %v468
    %s470 = smul.u32 %s152, 8
    %s471 = scalar_lea.vmem %s2, %s470
    %v472 = vld [vmem:[%s471] sm:$0xff]
    %s473 = smul.u32 %s161, 8
    %s474 = scalar_lea.vmem %s2, %s473
    %v475 = vld [vmem:[%s474] sm:$0xff]
    %477 = vset.pattern.permute.xlu0 0
    %478 = vperm.xlu0 %477, %v472
    %v479 = vpop.permute.xlu0 %478
    %v481 = vmul.f32 %v479, %v406
    %v482 = vsub.f32 1.0, %v472
    %484 = vset.pattern.permute.xlu0 0
    %485 = vperm.xlu0 %484, %v482
    %v486 = vpop.permute.xlu0 %485
    %v488 = vmul.f32 %v486, %v157
    %v489 = vadd.f32 %v481, %v488
    %v490 = vmul.f32 %v479, %v404
    %v491 = vmul.f32 %v486, %v158
    %v492 = vadd.f32 %v490, %v491
    %494 = vset.pattern.permute.xlu0 0
    %495 = vperm.xlu0 %494, %v475
    %v496 = vpop.permute.xlu0 %495
    %v498 = vmul.f32 %v496, %v469
    %v499 = vsub.f32 1.0, %v475
    %501 = vset.pattern.permute.xlu0 0
    %502 = vperm.xlu0 %501, %v499
    %v503 = vpop.permute.xlu0 %502
    %v505 = vmul.f32 %v503, %v159
    %v506 = vadd.f32 %v498, %v505
    %v507 = vmul.f32 %v496, %v467
    %v508 = vmul.f32 %v503, %v160
    %v509 = vadd.f32 %v507, %v508
    %s510 = scalar_lea.vmem %s5, %s470
    %511 = vst [vmem:[%s510] sm:$0xff] %v481
    %s512 = scalar_lea.vmem [#allocation2], %s473
    %513 = vst [vmem:[%s512] sm:$0xff] %v498
  $region26: #{rnn_forward.9} parent=0 // loop_footer
    %s156 = sadd.s32 1, %s152
  $region27: #{rnn_forward.9} parent=0 // loop_footer_branch
    %151 = sbr.rel target = $region23
  $region28: #{rnn_forward.9} parent=0 // loop_exit
    _
  %v514 = vld [vmem:[%s5] sm:$0xff]
  %v515 = vld [vmem:[%s5 + $0x8] sm:$0xff]
  %v516 = vld [vmem:[%s5 + $0x10] sm:$0xff]
  %v517 = vld [vmem:[%s5 + $0x18] sm:$0xff]
  %v518 = vld [vmem:[%s5 + $0x20] sm:$0xff]
  %v519 = vld [vmem:[%s5 + $0x28] sm:$0xff]
  %v520 = vld [vmem:[%s5 + $0x30] sm:$0xff]
  %v521 = vld [vmem:[%s5 + $0x38] sm:$0xff]
  %v522 = vld [vmem:[#allocation2] sm:$0xff]
  %v523 = vld [vmem:[#allocation2 + $0x8] sm:$0xff]
  %v524 = vld [vmem:[#allocation2 + $0x10] sm:$0xff]
  %v525 = vld [vmem:[#allocation2 + $0x18] sm:$0xff]
  %v526 = vld [vmem:[#allocation2 + $0x20] sm:$0xff]
  %v527 = vld [vmem:[#allocation2 + $0x28] sm:$0xff]
  %v528 = vld [vmem:[#allocation2 + $0x30] sm:$0xff]
  %v529 = vld [vmem:[#allocation2 + $0x38] sm:$0xff]
  %v530 = vadd.f32 %v514, %v522
  %v531 = vadd.f32 %v515, %v523
  %v532 = vadd.f32 %v516, %v524
  %v533 = vadd.f32 %v517, %v525
  %v534 = vadd.f32 %v518, %v526
  %v535 = vadd.f32 %v519, %v527
  %v536 = vadd.f32 %v520, %v528
  %v537 = vadd.f32 %v521, %v529
  %538 = vst [vmem:[%s5] sm:$0xff] %v530
  %539 = vst [vmem:[%s5 + $0x8] sm:$0xff] %v531
  %540 = vst [vmem:[%s5 + $0x10] sm:$0xff] %v532
  %541 = vst [vmem:[%s5 + $0x18] sm:$0xff] %v533
  %542 = vst [vmem:[%s5 + $0x20] sm:$0xff] %v534
  %543 = vst [vmem:[%s5 + $0x28] sm:$0xff] %v535
  %544 = vst [vmem:[%s5 + $0x30] sm:$0xff] %v536
  %545 = vst [vmem:[%s5 + $0x38] sm:$0xff] %v537
  %546 = vst [vmem:[%s6] sm:$0xff] %v157
  %s547 = scalar_lea.vmem %s6, 8
  %548 = vst [vmem:[%s547] sm:$0xff] %v159
  %549 = vst [vmem:[%s7] sm:$0xff] %v158
  %s550 = scalar_lea.vmem %s7, 8
  %551 = vst [vmem:[%s550] sm:$0xff] %v160
  // Predicated region
  $region29: #{rnn_forward.9} parent=0 // pred_check
    _
  $region30: #{rnn_forward.9} parent=0 // pred_check_branch
    %553 = sbr.rel (0) target = $region32
  $region31: #{rnn_forward.9} parent=0 // pred_region
    _
  $region32: #{rnn_forward.9} parent=0 // pred_fallthru
    _
  // Predicated region
  $region33: #{rnn_forward.9} parent=0 // pred_check
    _
  $region34: #{rnn_forward.9} parent=0 // pred_check_branch
    %555 = sbr.rel (0) target = $region36
  $region35: #{rnn_forward.9} parent=0 // pred_region
    _
  $region36: #{rnn_forward.9} parent=0 // pred_fallthru
    _
  // Predicated region
  $region37: #{rnn_forward.9} parent=0 // pred_check
    _
  $region38: #{rnn_forward.9} parent=0 // pred_check_branch
    %557 = sbr.rel (0) target = $region40
  $region39: #{rnn_forward.9} parent=0 // pred_region
    _
  $region40: #{rnn_forward.9} parent=0 // pred_fallthru
    _
  // Predicated region
  $region41: #{rnn_forward.9} parent=0 // pred_check
    _
  $region42: #{rnn_forward.9} parent=0 // pred_check_branch
    %559 = sbr.rel (0) target = $region44
  $region43: #{rnn_forward.9} parent=0 // pred_region
    _
  $region44: #{rnn_forward.9} parent=0 // pred_fallthru
    _
  // Predicated region
  $region45: #{rnn_forward.9} parent=0 // pred_check
    _
  $region46: #{rnn_forward.9} parent=0 // pred_check_branch
    %561 = sbr.rel (0) target = $region48
  $region47: #{rnn_forward.9} parent=0 // pred_region
    _
  $region48: #{rnn_forward.9} parent=0 // pred_fallthru
    _
  // Predicated region
  $region49: #{rnn_forward.9} parent=0 // pred_check
    _
  $region50: #{rnn_forward.9} parent=0 // pred_check_branch
    %563 = sbr.rel (0) target = $region52
  $region51: #{rnn_forward.9} parent=0 // pred_region
    _
  $region52: #{rnn_forward.9} parent=0 // pred_fallthru
    _

</llo_original>
